<compile_context>
chip_gen: v7x
topology: tpu7x:2x2x1
jax: 0.10.0
libtpu: 0.0.40
codegen_flags: <defaults>
</compile_context>

<pallas_src>
import functools

import jax
import jax.numpy as jnp
from jax.experimental import pallas as pl
from jax.experimental.pallas import tpu as pltpu

# Module defaults from GGNN.__init__
NODE_INPUT_DIM = 15
NUM_EDGE_TYPE = 5
OUTPUT_DIM = 12
HIDDEN = 32
NUM_STEP_PROP = 3

OUT_PAD = 128   # lane-dense output slab width
IN_PAD = 16     # node_input_dim padded to a multiple of 8


def _round_up(v, m):
    return (v + m - 1) // m * m


def _sigmoid(x):
    # exp -> EUP, approx reciprocal -> EUP; keeps the divide off the VPU slot.
    return pl.reciprocal(1.0 + jnp.exp(-x), approx=True)


def ggnn_kernel(
    # graph / data tensors
    x_ref, src_oh_ref, dst_scat_ref, inv_deg_ref, edge_oh_ref, batch_oh_ref,
    # lin0 + NNConv params (edge-type weights pre-fused to [H, T*H])
    lin0_w_ref, lin0_b_ref, wedge_ref, conv_b_ref,
    # fused GRU params: [H, 3H] weights (gate order r, z, n), [1, 3H] biases
    wi_ref, bi_ref, wh_ref, bh_ref,
    # fused readout params
    w1f_ref, b1f_ref, w2f_ref, b2f_ref,
    # output: [G_pad, OUT_PAD] lane-dense slab
    out_ref,
):
    f32 = jnp.float32
    H = HIDDEN
    T = NUM_EDGE_TYPE

    x = x_ref[...]                                   # [N, IN_PAD]
    # one-hot / scatter matrices travel HBM->VMEM as bf16 (exact for 0/1); cast once.
    src_oh = src_oh_ref[...].astype(f32)             # [E, N]
    dst_scat = dst_scat_ref[...].astype(f32)         # [N, E]  un-normalized 0/1
    batch_oh = batch_oh_ref[...].astype(f32)         # [G, N]
    inv_deg = inv_deg_ref[...]                       # [N, 1]  f32 mean normalization
    edge_oh = edge_oh_ref[...]                       # [E, T]

    wedge = wedge_ref[...]                           # [H, T*H]
    conv_b = conv_b_ref[...]                         # [1, H]
    wi = wi_ref[...]
    bi = bi_ref[...]
    wh = wh_ref[...]
    bh = bh_ref[...]
    w1f = w1f_ref[...]
    b1f = b1f_ref[...]
    w2f = w2f_ref[...]
    b2f = b2f_ref[...]

    # hoist per-edge-type masks out of the propagation loop (loop-invariant slices)
    masks = [edge_oh[:, t:t + 1] for t in range(T)]

    # out0 = relu(lin0(x))
    out0 = jnp.maximum(
        jnp.dot(x, lin0_w_ref[...], preferred_element_type=f32) + lin0_b_ref[...], 0.0)

    out = out0
    h = out0                                         # h = out.unsqueeze(0)

    for _ in range(NUM_STEP_PROP):
        # ---- NNConv(aggr='mean', root_weight=False) ----
        x_src = jnp.dot(src_oh, out, preferred_element_type=f32)       # [E, H]
        # all edge-type projections at once: [E, H] @ [H, T*H] -> [E, T*H]
        y = jnp.dot(x_src, wedge, preferred_element_type=f32)
        msgs = masks[0] * y[:, :H]                                      # VPU masked sum
        for t in range(1, T):
            msgs = msgs + masks[t] * y[:, t * H:(t + 1) * H]
        agg = jnp.dot(dst_scat, msgs, preferred_element_type=f32)      # [N, H]
        m = jnp.maximum(agg * inv_deg + conv_b, 0.0)

        # ---- GRU cell: 2 fused matmuls ----
        gi = jnp.dot(m, wi, preferred_element_type=f32) + bi           # [N, 3H]
        gh = jnp.dot(h, wh, preferred_element_type=f32) + bh           # [N, 3H]
        r = _sigmoid(gi[:, :H] + gh[:, :H])
        z = _sigmoid(gi[:, H:2 * H] + gh[:, H:2 * H])
        n = jnp.tanh(gi[:, 2 * H:] + r * gh[:, 2 * H:])
        h = (1.0 - z) * n + z * h
        out = h

    # ---- fused readout: i_network(cat(out, out0)) * j_network(out) ----
    cat = jnp.concatenate([out, out0], axis=-1)                         # [N, 2H]
    hid = _sigmoid(jnp.dot(cat, w1f, preferred_element_type=f32) + b1f)  # [N, 2H]
    y2 = jnp.dot(hid, w2f, preferred_element_type=f32) + b2f            # [N, 2*OUT_PAD]
    # i head lives in cols [0, OUT_PAD), j head in [OUT_PAD, 2*OUT_PAD); padding cols
    # are exactly zero (zero weights/biases) so i*j padding is 0.5 * 0 = 0.
    node_out = _sigmoid(y2[:, :OUT_PAD]) * y2[:, OUT_PAD:]              # [N, OUT_PAD]

    # ---- scatter_add over the batch vector -> lane-dense [G, 128] store ----
    out_ref[...] = jnp.dot(batch_oh, node_out, preferred_element_type=f32)


def init_params(key):
    """Deterministic synthetic parameters (shapes follow GGNN.__init__, pre-transposed)."""
    keys = jax.random.split(key, 24)
    ki = iter(keys)

    def lin(din, dout, scale=0.1):
        kw, kb = jax.random.split(next(ki))
        w = jax.random.normal(kw, (din, dout), jnp.float32) * scale   # pre-transposed
        b = jax.random.normal(kb, (1, dout), jnp.float32) * scale
        return w, b

    lin0_w, lin0_b = lin(NODE_INPUT_DIM, HIDDEN)
    # nn.Embedding(num_edge_type, H*H), pre-reshaped to [T, H, H] (row-major .view(H, H))
    embed3 = jax.random.normal(next(ki), (NUM_EDGE_TYPE, HIDDEN, HIDDEN), jnp.float32) * 0.1
    conv_b = jax.random.normal(next(ki), (1, HIDDEN), jnp.float32) * 0.1   # NNConv bias

    # GRU(H, H): per-gate [H, H] (transposed) + [1, H] biases, PyTorch gate order r, z, n
    w_ir, b_ir = lin(HIDDEN, HIDDEN)
    w_iz, b_iz = lin(HIDDEN, HIDDEN)
    w_in, b_in = lin(HIDDEN, HIDDEN)
    w_hr, b_hr = lin(HIDDEN, HIDDEN)
    w_hz, b_hz = lin(HIDDEN, HIDDEN)
    w_hn, b_hn = lin(HIDDEN, HIDDEN)

    # i_network: Linear(2H, H) split into the `out` half and the `out0` half
    iw1a, ib1 = lin(HIDDEN, HIDDEN)
    iw1b, _ = lin(HIDDEN, HIDDEN)
    iw2, ib2 = lin(HIDDEN, OUTPUT_DIM)

    # j_network
    jw1, jb1 = lin(HIDDEN, HIDDEN)
    jw2, jb2 = lin(HIDDEN, OUTPUT_DIM)

    return (lin0_w, lin0_b, embed3, conv_b,
            w_ir, w_iz, w_in, w_hr, w_hz, w_hn,
            b_ir, b_iz, b_in, b_hr, b_hz, b_hn,
            iw1a, iw1b, ib1, iw2, ib2,
            jw1, jb1, jw2, jb2)


@functools.partial(jax.jit, static_argnames=("num_graphs",))
def ggnn_forward(x, edge_index, edge_attr, batch, params, num_graphs):
    (lin0_w, lin0_b, embed3, conv_b,
     w_ir, w_iz, w_in, w_hr, w_hz, w_hn,
     b_ir, b_iz, b_in, b_hr, b_hz, b_hn,
     iw1a, iw1b, ib1, iw2, ib2,
     jw1, jb1, jw2, jb2) = params

    f32 = jnp.float32
    bf16 = jnp.bfloat16
    H = HIDDEN

    n = x.shape[0]
    e = edge_index.shape[1]
    n_pad = _round_up(n, 8)
    e_pad = _round_up(e, 8)
    g_pad = _round_up(num_graphs, 8)

    # Pad nodes / edges / graphs; padded indices are -1 so one_hot rows are all-zero.
    x_p = jnp.zeros((n_pad, IN_PAD), f32).at[:n, :NODE_INPUT_DIM].set(x)
    src = jnp.full((e_pad,), -1, jnp.int32).at[:e].set(edge_index[0])
    dst = jnp.full((e_pad,), -1, jnp.int32).at[:e].set(edge_index[1])
    ea = jnp.full((e_pad,), -1, jnp.int32).at[:e].set(edge_attr)
    bat = jnp.full((n_pad,), -1, jnp.int32).at[:n].set(batch)

    # Dense one-hot glue; 0/1 matrices are exact in bf16 (half the HBM->VMEM bytes).
    src_oh = jax.nn.one_hot(src, n_pad, dtype=bf16)                     # [E, N]
    dst_oh = jax.nn.one_hot(dst, n_pad, dtype=f32)                      # [E, N]
    deg = dst_oh.sum(axis=0)                                            # [N]
    inv_deg = (1.0 / jnp.maximum(deg, 1.0))[:, None].astype(f32)        # [N, 1]
    dst_scat = dst_oh.T.astype(bf16)                                    # [N, E]
    edge_oh = jax.nn.one_hot(ea, NUM_EDGE_TYPE, dtype=f32)              # [E, T]
    batch_oh = jax.nn.one_hot(bat, g_pad, dtype=bf16).T                 # [G, N]

    # ---- weight fusion (once per call, outside the kernel) ----
    lin0_w_p = jnp.zeros((IN_PAD, H), f32).at[:NODE_INPUT_DIM].set(lin0_w)
    # [T, H, H] -> [H, T*H] so a single matmul computes all edge-type projections
    wedge = jnp.transpose(embed3, (1, 0, 2)).reshape(H, NUM_EDGE_TYPE * H)
    # GRU gates fused (r, z, n)
    wi = jnp.concatenate([w_ir, w_iz, w_in], axis=1)                    # [H, 3H]
    bi = jnp.concatenate([b_ir, b_iz, b_in], axis=1)                    # [1, 3H]
    wh = jnp.concatenate([w_hr, w_hz, w_hn], axis=1)
    bh = jnp.concatenate([b_hr, b_hz, b_hn], axis=1)
    # readout layer 1: [out | out0] @ w1f -> [i_hid | j_hid]
    w1f = jnp.zeros((2 * H, 2 * H), f32)
    w1f = w1f.at[:H, :H].set(iw1a).at[H:, :H].set(iw1b).at[:H, H:].set(jw1)
    b1f = jnp.concatenate([ib1, jb1], axis=1)                           # [1, 2H]
    # readout layer 2: block-diagonal into a lane-dense 2*128 slab
    w2f = jnp.zeros((2 * H, 2 * OUT_PAD), f32)
    w2f = w2f.at[:H, :OUTPUT_DIM].set(iw2)
    w2f = w2f.at[H:, OUT_PAD:OUT_PAD + OUTPUT_DIM].set(jw2)
    b2f = jnp.zeros((1, 2 * OUT_PAD), f32)
    b2f = b2f.at[:, :OUTPUT_DIM].set(ib2)
    b2f = b2f.at[:, OUT_PAD:OUT_PAD + OUTPUT_DIM].set(jb2)

    inputs = [x_p, src_oh, dst_scat, inv_deg, edge_oh, batch_oh,
              lin0_w_p, lin0_b, wedge, conv_b,
              wi, bi, wh, bh,
              w1f, b1f, w2f, b2f]

    in_bytes = sum(int(a.size) * a.dtype.itemsize for a in inputs)
    out_bytes = g_pad * OUT_PAD * 4
    flops = 2 * (
        n_pad * IN_PAD * H
        + NUM_STEP_PROP * (e_pad * n_pad * H                     # gather
                           + e_pad * H * NUM_EDGE_TYPE * H       # edge-type projection
                           + n_pad * e_pad * H                   # scatter-mean
                           + 2 * n_pad * H * 3 * H)              # GRU
        + n_pad * 2 * H * 2 * H + n_pad * 2 * H * 2 * OUT_PAD    # readout
        + g_pad * n_pad * OUT_PAD)                               # scatter_add
    transcendentals = NUM_STEP_PROP * n_pad * 3 * H + n_pad * (2 * H + OUT_PAD)
    cost = pl.CostEstimate(flops=flops, transcendentals=transcendentals,
                           bytes_accessed=in_bytes + out_bytes)

    vmem = pltpu.MemorySpace.VMEM
    out_pad = pl.pallas_call(
        ggnn_kernel,
        out_shape=jax.ShapeDtypeStruct((g_pad, OUT_PAD), f32),
        in_specs=[pl.BlockSpec(memory_space=vmem)] * len(inputs),
        out_specs=pl.BlockSpec(memory_space=vmem),
        cost_estimate=cost,
        compiler_params=pltpu.CompilerParams(
            # size the scoped VMEM limit to the actual footprint (+ headroom) instead of
            # the 16/32 MiB default; capped below v7x's 64 MiB physical VMEM.
            vmem_limit_bytes=min(max(4 * (in_bytes + out_bytes) + (4 << 20), 16 << 20),
                                 56 << 20)),
    )(*inputs)

    return out_pad[:num_graphs, :OUTPUT_DIM]


if __name__ == "__main__":
    key = jax.random.PRNGKey(0)
    k_x, k_src, k_dst, k_ea, k_p = jax.random.split(key, 5)

    N, E, G = 8, 16, 2
    x = jax.random.normal(k_x, (N, NODE_INPUT_DIM), jnp.float32)
    src = jax.random.randint(k_src, (E,), 0, N, dtype=jnp.int32)
    dst = jax.random.randint(k_dst, (E,), 0, N, dtype=jnp.int32)
    edge_index = jnp.stack([src, dst])                                     # [2, E]
    edge_attr = jax.random.randint(k_ea, (E,), 0, NUM_EDGE_TYPE, dtype=jnp.int32)
    batch = jnp.concatenate([jnp.zeros(N // 2, jnp.int32),
                             jnp.ones(N - N // 2, jnp.int32)])             # [N]

    params = init_params(k_p)

    out = ggnn_forward(x, edge_index, edge_attr, batch, params, num_graphs=G)
    out = jax.block_until_ready(out)
    assert out.shape == (G, OUTPUT_DIM) and out.dtype == jnp.float32
    print("KERNEL_OK")
</pallas_src>

<mosaic_0001>
module attributes {stable_mosaic.version = 11 : i64} {
  func.func @ggnn_kernel(%arg0: memref<8x16xf32, #tpu.memory_space<vmem>>, %arg1: memref<16x8xbf16, #tpu.memory_space<vmem>>, %arg2: memref<8x16xbf16, #tpu.memory_space<vmem>>, %arg3: memref<8x1xf32, #tpu.memory_space<vmem>>, %arg4: memref<16x5xf32, #tpu.memory_space<vmem>>, %arg5: memref<8x8xbf16, #tpu.memory_space<vmem>>, %arg6: memref<16x32xf32, #tpu.memory_space<vmem>>, %arg7: memref<1x32xf32, #tpu.memory_space<vmem>>, %arg8: memref<32x160xf32, #tpu.memory_space<vmem>>, %arg9: memref<1x32xf32, #tpu.memory_space<vmem>>, %arg10: memref<32x96xf32, #tpu.memory_space<vmem>>, %arg11: memref<1x96xf32, #tpu.memory_space<vmem>>, %arg12: memref<32x96xf32, #tpu.memory_space<vmem>>, %arg13: memref<1x96xf32, #tpu.memory_space<vmem>>, %arg14: memref<64x64xf32, #tpu.memory_space<vmem>>, %arg15: memref<1x64xf32, #tpu.memory_space<vmem>>, %arg16: memref<64x256xf32, #tpu.memory_space<vmem>>, %arg17: memref<1x256xf32, #tpu.memory_space<vmem>>, %arg18: memref<8x128xf32, #tpu.memory_space<vmem>>) attributes {dimension_semantics = [], scalar_prefetch = 0 : i64, scratch_operands = 0 : i64, tpu.core_type = #tpu.core_type<tc>} {
    %c0 = arith.constant 0 : index
    %c0_0 = arith.constant 0 : index
    %0 = vector.load %arg0[%c0, %c0_0] : memref<8x16xf32, #tpu.memory_space<vmem>>, vector<8x16xf32>
    %c0_1 = arith.constant 0 : index
    %c0_2 = arith.constant 0 : index
    %1 = vector.load %arg1[%c0_1, %c0_2] : memref<16x8xbf16, #tpu.memory_space<vmem>>, vector<16x8xbf16>
    %2 = arith.extf %1 : vector<16x8xbf16> to vector<16x8xf32>
    %c0_3 = arith.constant 0 : index
    %c0_4 = arith.constant 0 : index
    %3 = vector.load %arg2[%c0_3, %c0_4] : memref<8x16xbf16, #tpu.memory_space<vmem>>, vector<8x16xbf16>
    %4 = arith.extf %3 : vector<8x16xbf16> to vector<8x16xf32>
    %c0_5 = arith.constant 0 : index
    %c0_6 = arith.constant 0 : index
    %5 = vector.load %arg5[%c0_5, %c0_6] : memref<8x8xbf16, #tpu.memory_space<vmem>>, vector<8x8xbf16>
    %6 = arith.extf %5 : vector<8x8xbf16> to vector<8x8xf32>
    %c0_7 = arith.constant 0 : index
    %c0_8 = arith.constant 0 : index
    %7 = vector.load %arg3[%c0_7, %c0_8] : memref<8x1xf32, #tpu.memory_space<vmem>>, vector<8x1xf32>
    %c0_9 = arith.constant 0 : index
    %c0_10 = arith.constant 0 : index
    %8 = vector.load %arg4[%c0_9, %c0_10] : memref<16x5xf32, #tpu.memory_space<vmem>>, vector<16x5xf32>
    %c0_11 = arith.constant 0 : index
    %c0_12 = arith.constant 0 : index
    %9 = vector.load %arg8[%c0_11, %c0_12] : memref<32x160xf32, #tpu.memory_space<vmem>>, vector<32x160xf32>
    %c0_13 = arith.constant 0 : index
    %c0_14 = arith.constant 0 : index
    %10 = vector.load %arg9[%c0_13, %c0_14] : memref<1x32xf32, #tpu.memory_space<vmem>>, vector<1x32xf32>
    %c0_15 = arith.constant 0 : index
    %c0_16 = arith.constant 0 : index
    %11 = vector.load %arg10[%c0_15, %c0_16] : memref<32x96xf32, #tpu.memory_space<vmem>>, vector<32x96xf32>
    %c0_17 = arith.constant 0 : index
    %c0_18 = arith.constant 0 : index
    %12 = vector.load %arg11[%c0_17, %c0_18] : memref<1x96xf32, #tpu.memory_space<vmem>>, vector<1x96xf32>
    %c0_19 = arith.constant 0 : index
    %c0_20 = arith.constant 0 : index
    %13 = vector.load %arg12[%c0_19, %c0_20] : memref<32x96xf32, #tpu.memory_space<vmem>>, vector<32x96xf32>
    %c0_21 = arith.constant 0 : index
    %c0_22 = arith.constant 0 : index
    %14 = vector.load %arg13[%c0_21, %c0_22] : memref<1x96xf32, #tpu.memory_space<vmem>>, vector<1x96xf32>
    %c0_23 = arith.constant 0 : index
    %c0_24 = arith.constant 0 : index
    %15 = vector.load %arg14[%c0_23, %c0_24] : memref<64x64xf32, #tpu.memory_space<vmem>>, vector<64x64xf32>
    %c0_25 = arith.constant 0 : index
    %c0_26 = arith.constant 0 : index
    %16 = vector.load %arg15[%c0_25, %c0_26] : memref<1x64xf32, #tpu.memory_space<vmem>>, vector<1x64xf32>
    %c0_27 = arith.constant 0 : index
    %c0_28 = arith.constant 0 : index
    %17 = vector.load %arg16[%c0_27, %c0_28] : memref<64x256xf32, #tpu.memory_space<vmem>>, vector<64x256xf32>
    %c0_29 = arith.constant 0 : index
    %c0_30 = arith.constant 0 : index
    %18 = vector.load %arg17[%c0_29, %c0_30] : memref<1x256xf32, #tpu.memory_space<vmem>>, vector<1x256xf32>
    %19 = vector.extract_strided_slice %8 {offsets = [0, 0], sizes = [16, 1], strides = [1, 1]} : vector<16x5xf32> to vector<16x1xf32>
    %20 = vector.extract_strided_slice %8 {offsets = [0, 1], sizes = [16, 1], strides = [1, 1]} : vector<16x5xf32> to vector<16x1xf32>
    %21 = vector.extract_strided_slice %8 {offsets = [0, 2], sizes = [16, 1], strides = [1, 1]} : vector<16x5xf32> to vector<16x1xf32>
    %22 = vector.extract_strided_slice %8 {offsets = [0, 3], sizes = [16, 1], strides = [1, 1]} : vector<16x5xf32> to vector<16x1xf32>
    %23 = vector.extract_strided_slice %8 {offsets = [0, 4], sizes = [16, 1], strides = [1, 1]} : vector<16x5xf32> to vector<16x1xf32>
    %c0_31 = arith.constant 0 : index
    %c0_32 = arith.constant 0 : index
    %24 = vector.load %arg6[%c0_31, %c0_32] : memref<16x32xf32, #tpu.memory_space<vmem>>, vector<16x32xf32>
    %cst = arith.constant dense<0.000000e+00> : vector<8x32xf32>
    %25 = tpu.matmul %0, %24, %cst {dimension_numbers = #tpu.dot_dimension_numbers<[1], [0], [0], [1], [0, 0, 1, 1], [], []>} : vector<8x16xf32>, vector<16x32xf32>, vector<8x32xf32> -> vector<8x32xf32>
    %c0_33 = arith.constant 0 : index
    %c0_34 = arith.constant 0 : index
    %26 = vector.load %arg7[%c0_33, %c0_34] : memref<1x32xf32, #tpu.memory_space<vmem>>, vector<1x32xf32>
    %27 = vector.broadcast %26 : vector<1x32xf32> to vector<8x32xf32>
    %28 = arith.addf %25, %27 : vector<8x32xf32>
    %cst_35 = arith.constant 0.000000e+00 : f32
    %29 = vector.broadcast %cst_35 : f32 to vector<8x32xf32>
    %30 = arith.maximumf %28, %29 : vector<8x32xf32>
    %cst_36 = arith.constant dense<0.000000e+00> : vector<16x32xf32>
    %31 = tpu.matmul %2, %30, %cst_36 {dimension_numbers = #tpu.dot_dimension_numbers<[1], [0], [0], [1], [0, 0, 1, 1], [], []>} : vector<16x8xf32>, vector<8x32xf32>, vector<16x32xf32> -> vector<16x32xf32>
    %cst_37 = arith.constant dense<0.000000e+00> : vector<16x160xf32>
    %32 = tpu.matmul %31, %9, %cst_37 {dimension_numbers = #tpu.dot_dimension_numbers<[1], [0], [0], [1], [0, 0, 1, 1], [], []>} : vector<16x32xf32>, vector<32x160xf32>, vector<16x160xf32> -> vector<16x160xf32>
    %33 = vector.extract_strided_slice %32 {offsets = [0, 0], sizes = [16, 32], strides = [1, 1]} : vector<16x160xf32> to vector<16x32xf32>
    %34 = vector.broadcast %19 : vector<16x1xf32> to vector<16x32xf32>
    %35 = arith.mulf %34, %33 : vector<16x32xf32>
    %36 = vector.extract_strided_slice %32 {offsets = [0, 32], sizes = [16, 32], strides = [1, 1]} : vector<16x160xf32> to vector<16x32xf32>
    %37 = vector.broadcast %20 : vector<16x1xf32> to vector<16x32xf32>
    %38 = arith.mulf %37, %36 : vector<16x32xf32>
    %39 = arith.addf %35, %38 : vector<16x32xf32>
    %40 = vector.extract_strided_slice %32 {offsets = [0, 64], sizes = [16, 32], strides = [1, 1]} : vector<16x160xf32> to vector<16x32xf32>
    %41 = vector.broadcast %21 : vector<16x1xf32> to vector<16x32xf32>
    %42 = arith.mulf %41, %40 : vector<16x32xf32>
    %43 = arith.addf %39, %42 : vector<16x32xf32>
    %44 = vector.extract_strided_slice %32 {offsets = [0, 96], sizes = [16, 32], strides = [1, 1]} : vector<16x160xf32> to vector<16x32xf32>
    %45 = vector.broadcast %22 : vector<16x1xf32> to vector<16x32xf32>
    %46 = arith.mulf %45, %44 : vector<16x32xf32>
    %47 = arith.addf %43, %46 : vector<16x32xf32>
    %48 = vector.extract_strided_slice %32 {offsets = [0, 128], sizes = [16, 32], strides = [1, 1]} : vector<16x160xf32> to vector<16x32xf32>
    %49 = vector.broadcast %23 : vector<16x1xf32> to vector<16x32xf32>
    %50 = arith.mulf %49, %48 : vector<16x32xf32>
    %51 = arith.addf %47, %50 : vector<16x32xf32>
    %cst_38 = arith.constant dense<0.000000e+00> : vector<8x32xf32>
    %52 = tpu.matmul %4, %51, %cst_38 {dimension_numbers = #tpu.dot_dimension_numbers<[1], [0], [0], [1], [0, 0, 1, 1], [], []>} : vector<8x16xf32>, vector<16x32xf32>, vector<8x32xf32> -> vector<8x32xf32>
    %53 = vector.broadcast %7 : vector<8x1xf32> to vector<8x32xf32>
    %54 = arith.mulf %52, %53 : vector<8x32xf32>
    %55 = vector.broadcast %10 : vector<1x32xf32> to vector<8x32xf32>
    %56 = arith.addf %54, %55 : vector<8x32xf32>
    %cst_39 = arith.constant 0.000000e+00 : f32
    %57 = vector.broadcast %cst_39 : f32 to vector<8x32xf32>
    %58 = arith.maximumf %56, %57 : vector<8x32xf32>
    %cst_40 = arith.constant dense<0.000000e+00> : vector<8x96xf32>
    %59 = tpu.matmul %58, %11, %cst_40 {dimension_numbers = #tpu.dot_dimension_numbers<[1], [0], [0], [1], [0, 0, 1, 1], [], []>} : vector<8x32xf32>, vector<32x96xf32>, vector<8x96xf32> -> vector<8x96xf32>
    %60 = vector.broadcast %12 : vector<1x96xf32> to vector<8x96xf32>
    %61 = arith.addf %59, %60 : vector<8x96xf32>
    %cst_41 = arith.constant dense<0.000000e+00> : vector<8x96xf32>
    %62 = tpu.matmul %30, %13, %cst_41 {dimension_numbers = #tpu.dot_dimension_numbers<[1], [0], [0], [1], [0, 0, 1, 1], [], []>} : vector<8x32xf32>, vector<32x96xf32>, vector<8x96xf32> -> vector<8x96xf32>
    %63 = vector.broadcast %14 : vector<1x96xf32> to vector<8x96xf32>
    %64 = arith.addf %62, %63 : vector<8x96xf32>
    %65 = vector.extract_strided_slice %61 {offsets = [0, 0], sizes = [8, 32], strides = [1, 1]} : vector<8x96xf32> to vector<8x32xf32>
    %66 = vector.extract_strided_slice %64 {offsets = [0, 0], sizes = [8, 32], strides = [1, 1]} : vector<8x96xf32> to vector<8x32xf32>
    %67 = arith.addf %65, %66 : vector<8x32xf32>
    %cst_42 = arith.constant 0.000000e+00 : f32
    %68 = vector.broadcast %cst_42 : f32 to vector<8x32xf32>
    %69 = arith.subf %68, %67 : vector<8x32xf32>
    %70 = math.exp %69 : vector<8x32xf32>
    %cst_43 = arith.constant 1.000000e+00 : f32
    %71 = vector.broadcast %cst_43 : f32 to vector<8x32xf32>
    %72 = arith.addf %71, %70 : vector<8x32xf32>
    %73 = tpu.reciprocal %72 {approx = true} : vector<8x32xf32> -> vector<8x32xf32>
    %74 = vector.extract_strided_slice %61 {offsets = [0, 32], sizes = [8, 32], strides = [1, 1]} : vector<8x96xf32> to vector<8x32xf32>
    %75 = vector.extract_strided_slice %64 {offsets = [0, 32], sizes = [8, 32], strides = [1, 1]} : vector<8x96xf32> to vector<8x32xf32>
    %76 = arith.addf %74, %75 : vector<8x32xf32>
    %cst_44 = arith.constant 0.000000e+00 : f32
    %77 = vector.broadcast %cst_44 : f32 to vector<8x32xf32>
    %78 = arith.subf %77, %76 : vector<8x32xf32>
    %79 = math.exp %78 : vector<8x32xf32>
    %cst_45 = arith.constant 1.000000e+00 : f32
    %80 = vector.broadcast %cst_45 : f32 to vector<8x32xf32>
    %81 = arith.addf %80, %79 : vector<8x32xf32>
    %82 = tpu.reciprocal %81 {approx = true} : vector<8x32xf32> -> vector<8x32xf32>
    %83 = vector.extract_strided_slice %61 {offsets = [0, 64], sizes = [8, 32], strides = [1, 1]} : vector<8x96xf32> to vector<8x32xf32>
    %84 = vector.extract_strided_slice %64 {offsets = [0, 64], sizes = [8, 32], strides = [1, 1]} : vector<8x96xf32> to vector<8x32xf32>
    %85 = arith.mulf %73, %84 : vector<8x32xf32>
    %86 = arith.addf %83, %85 : vector<8x32xf32>
    %87 = math.tanh %86 : vector<8x32xf32>
    %cst_46 = arith.constant 1.000000e+00 : f32
    %88 = vector.broadcast %cst_46 : f32 to vector<8x32xf32>
    %89 = arith.subf %88, %82 : vector<8x32xf32>
    %90 = arith.mulf %89, %87 : vector<8x32xf32>
    %91 = arith.mulf %82, %30 : vector<8x32xf32>
    %92 = arith.addf %90, %91 : vector<8x32xf32>
    %cst_47 = arith.constant dense<0.000000e+00> : vector<16x32xf32>
    %93 = tpu.matmul %2, %92, %cst_47 {dimension_numbers = #tpu.dot_dimension_numbers<[1], [0], [0], [1], [0, 0, 1, 1], [], []>} : vector<16x8xf32>, vector<8x32xf32>, vector<16x32xf32> -> vector<16x32xf32>
    %cst_48 = arith.constant dense<0.000000e+00> : vector<16x160xf32>
    %94 = tpu.matmul %93, %9, %cst_48 {dimension_numbers = #tpu.dot_dimension_numbers<[1], [0], [0], [1], [0, 0, 1, 1], [], []>} : vector<16x32xf32>, vector<32x160xf32>, vector<16x160xf32> -> vector<16x160xf32>
    %95 = vector.extract_strided_slice %94 {offsets = [0, 0], sizes = [16, 32], strides = [1, 1]} : vector<16x160xf32> to vector<16x32xf32>
    %96 = vector.broadcast %19 : vector<16x1xf32> to vector<16x32xf32>
    %97 = arith.mulf %96, %95 : vector<16x32xf32>
    %98 = vector.extract_strided_slice %94 {offsets = [0, 32], sizes = [16, 32], strides = [1, 1]} : vector<16x160xf32> to vector<16x32xf32>
    %99 = vector.broadcast %20 : vector<16x1xf32> to vector<16x32xf32>
    %100 = arith.mulf %99, %98 : vector<16x32xf32>
    %101 = arith.addf %97, %100 : vector<16x32xf32>
    %102 = vector.extract_strided_slice %94 {offsets = [0, 64], sizes = [16, 32], strides = [1, 1]} : vector<16x160xf32> to vector<16x32xf32>
    %103 = vector.broadcast %21 : vector<16x1xf32> to vector<16x32xf32>
    %104 = arith.mulf %103, %102 : vector<16x32xf32>
    %105 = arith.addf %101, %104 : vector<16x32xf32>
    %106 = vector.extract_strided_slice %94 {offsets = [0, 96], sizes = [16, 32], strides = [1, 1]} : vector<16x160xf32> to vector<16x32xf32>
    %107 = vector.broadcast %22 : vector<16x1xf32> to vector<16x32xf32>
    %108 = arith.mulf %107, %106 : vector<16x32xf32>
    %109 = arith.addf %105, %108 : vector<16x32xf32>
    %110 = vector.extract_strided_slice %94 {offsets = [0, 128], sizes = [16, 32], strides = [1, 1]} : vector<16x160xf32> to vector<16x32xf32>
    %111 = vector.broadcast %23 : vector<16x1xf32> to vector<16x32xf32>
    %112 = arith.mulf %111, %110 : vector<16x32xf32>
    %113 = arith.addf %109, %112 : vector<16x32xf32>
    %cst_49 = arith.constant dense<0.000000e+00> : vector<8x32xf32>
    %114 = tpu.matmul %4, %113, %cst_49 {dimension_numbers = #tpu.dot_dimension_numbers<[1], [0], [0], [1], [0, 0, 1, 1], [], []>} : vector<8x16xf32>, vector<16x32xf32>, vector<8x32xf32> -> vector<8x32xf32>
    %115 = vector.broadcast %7 : vector<8x1xf32> to vector<8x32xf32>
    %116 = arith.mulf %114, %115 : vector<8x32xf32>
    %117 = vector.broadcast %10 : vector<1x32xf32> to vector<8x32xf32>
    %118 = arith.addf %116, %117 : vector<8x32xf32>
    %cst_50 = arith.constant 0.000000e+00 : f32
    %119 = vector.broadcast %cst_50 : f32 to vector<8x32xf32>
    %120 = arith.maximumf %118, %119 : vector<8x32xf32>
    %cst_51 = arith.constant dense<0.000000e+00> : vector<8x96xf32>
    %121 = tpu.matmul %120, %11, %cst_51 {dimension_numbers = #tpu.dot_dimension_numbers<[1], [0], [0], [1], [0, 0, 1, 1], [], []>} : vector<8x32xf32>, vector<32x96xf32>, vector<8x96xf32> -> vector<8x96xf32>
    %122 = vector.broadcast %12 : vector<1x96xf32> to vector<8x96xf32>
    %123 = arith.addf %121, %122 : vector<8x96xf32>
    %cst_52 = arith.constant dense<0.000000e+00> : vector<8x96xf32>
    %124 = tpu.matmul %92, %13, %cst_52 {dimension_numbers = #tpu.dot_dimension_numbers<[1], [0], [0], [1], [0, 0, 1, 1], [], []>} : vector<8x32xf32>, vector<32x96xf32>, vector<8x96xf32> -> vector<8x96xf32>
    %125 = vector.broadcast %14 : vector<1x96xf32> to vector<8x96xf32>
    %126 = arith.addf %124, %125 : vector<8x96xf32>
    %127 = vector.extract_strided_slice %123 {offsets = [0, 0], sizes = [8, 32], strides = [1, 1]} : vector<8x96xf32> to vector<8x32xf32>
    %128 = vector.extract_strided_slice %126 {offsets = [0, 0], sizes = [8, 32], strides = [1, 1]} : vector<8x96xf32> to vector<8x32xf32>
    %129 = arith.addf %127, %128 : vector<8x32xf32>
    %cst_53 = arith.constant 0.000000e+00 : f32
    %130 = vector.broadcast %cst_53 : f32 to vector<8x32xf32>
    %131 = arith.subf %130, %129 : vector<8x32xf32>
    %132 = math.exp %131 : vector<8x32xf32>
    %cst_54 = arith.constant 1.000000e+00 : f32
    %133 = vector.broadcast %cst_54 : f32 to vector<8x32xf32>
    %134 = arith.addf %133, %132 : vector<8x32xf32>
    %135 = tpu.reciprocal %134 {approx = true} : vector<8x32xf32> -> vector<8x32xf32>
    %136 = vector.extract_strided_slice %123 {offsets = [0, 32], sizes = [8, 32], strides = [1, 1]} : vector<8x96xf32> to vector<8x32xf32>
    %137 = vector.extract_strided_slice %126 {offsets = [0, 32], sizes = [8, 32], strides = [1, 1]} : vector<8x96xf32> to vector<8x32xf32>
    %138 = arith.addf %136, %137 : vector<8x32xf32>
    %cst_55 = arith.constant 0.000000e+00 : f32
    %139 = vector.broadcast %cst_55 : f32 to vector<8x32xf32>
    %140 = arith.subf %139, %138 : vector<8x32xf32>
    %141 = math.exp %140 : vector<8x32xf32>
    %cst_56 = arith.constant 1.000000e+00 : f32
    %142 = vector.broadcast %cst_56 : f32 to vector<8x32xf32>
    %143 = arith.addf %142, %141 : vector<8x32xf32>
    %144 = tpu.reciprocal %143 {approx = true} : vector<8x32xf32> -> vector<8x32xf32>
    %145 = vector.extract_strided_slice %123 {offsets = [0, 64], sizes = [8, 32], strides = [1, 1]} : vector<8x96xf32> to vector<8x32xf32>
    %146 = vector.extract_strided_slice %126 {offsets = [0, 64], sizes = [8, 32], strides = [1, 1]} : vector<8x96xf32> to vector<8x32xf32>
    %147 = arith.mulf %135, %146 : vector<8x32xf32>
    %148 = arith.addf %145, %147 : vector<8x32xf32>
    %149 = math.tanh %148 : vector<8x32xf32>
    %cst_57 = arith.constant 1.000000e+00 : f32
    %150 = vector.broadcast %cst_57 : f32 to vector<8x32xf32>
    %151 = arith.subf %150, %144 : vector<8x32xf32>
    %152 = arith.mulf %151, %149 : vector<8x32xf32>
    %153 = arith.mulf %144, %92 : vector<8x32xf32>
    %154 = arith.addf %152, %153 : vector<8x32xf32>
    %cst_58 = arith.constant dense<0.000000e+00> : vector<16x32xf32>
    %155 = tpu.matmul %2, %154, %cst_58 {dimension_numbers = #tpu.dot_dimension_numbers<[1], [0], [0], [1], [0, 0, 1, 1], [], []>} : vector<16x8xf32>, vector<8x32xf32>, vector<16x32xf32> -> vector<16x32xf32>
    %cst_59 = arith.constant dense<0.000000e+00> : vector<16x160xf32>
    %156 = tpu.matmul %155, %9, %cst_59 {dimension_numbers = #tpu.dot_dimension_numbers<[1], [0], [0], [1], [0, 0, 1, 1], [], []>} : vector<16x32xf32>, vector<32x160xf32>, vector<16x160xf32> -> vector<16x160xf32>
    %157 = vector.extract_strided_slice %156 {offsets = [0, 0], sizes = [16, 32], strides = [1, 1]} : vector<16x160xf32> to vector<16x32xf32>
    %158 = vector.broadcast %19 : vector<16x1xf32> to vector<16x32xf32>
    %159 = arith.mulf %158, %157 : vector<16x32xf32>
    %160 = vector.extract_strided_slice %156 {offsets = [0, 32], sizes = [16, 32], strides = [1, 1]} : vector<16x160xf32> to vector<16x32xf32>
    %161 = vector.broadcast %20 : vector<16x1xf32> to vector<16x32xf32>
    %162 = arith.mulf %161, %160 : vector<16x32xf32>
    %163 = arith.addf %159, %162 : vector<16x32xf32>
    %164 = vector.extract_strided_slice %156 {offsets = [0, 64], sizes = [16, 32], strides = [1, 1]} : vector<16x160xf32> to vector<16x32xf32>
    %165 = vector.broadcast %21 : vector<16x1xf32> to vector<16x32xf32>
    %166 = arith.mulf %165, %164 : vector<16x32xf32>
    %167 = arith.addf %163, %166 : vector<16x32xf32>
    %168 = vector.extract_strided_slice %156 {offsets = [0, 96], sizes = [16, 32], strides = [1, 1]} : vector<16x160xf32> to vector<16x32xf32>
    %169 = vector.broadcast %22 : vector<16x1xf32> to vector<16x32xf32>
    %170 = arith.mulf %169, %168 : vector<16x32xf32>
    %171 = arith.addf %167, %170 : vector<16x32xf32>
    %172 = vector.extract_strided_slice %156 {offsets = [0, 128], sizes = [16, 32], strides = [1, 1]} : vector<16x160xf32> to vector<16x32xf32>
    %173 = vector.broadcast %23 : vector<16x1xf32> to vector<16x32xf32>
    %174 = arith.mulf %173, %172 : vector<16x32xf32>
    %175 = arith.addf %171, %174 : vector<16x32xf32>
    %cst_60 = arith.constant dense<0.000000e+00> : vector<8x32xf32>
    %176 = tpu.matmul %4, %175, %cst_60 {dimension_numbers = #tpu.dot_dimension_numbers<[1], [0], [0], [1], [0, 0, 1, 1], [], []>} : vector<8x16xf32>, vector<16x32xf32>, vector<8x32xf32> -> vector<8x32xf32>
    %177 = vector.broadcast %7 : vector<8x1xf32> to vector<8x32xf32>
    %178 = arith.mulf %176, %177 : vector<8x32xf32>
    %179 = vector.broadcast %10 : vector<1x32xf32> to vector<8x32xf32>
    %180 = arith.addf %178, %179 : vector<8x32xf32>
    %cst_61 = arith.constant 0.000000e+00 : f32
    %181 = vector.broadcast %cst_61 : f32 to vector<8x32xf32>
    %182 = arith.maximumf %180, %181 : vector<8x32xf32>
    %cst_62 = arith.constant dense<0.000000e+00> : vector<8x96xf32>
    %183 = tpu.matmul %182, %11, %cst_62 {dimension_numbers = #tpu.dot_dimension_numbers<[1], [0], [0], [1], [0, 0, 1, 1], [], []>} : vector<8x32xf32>, vector<32x96xf32>, vector<8x96xf32> -> vector<8x96xf32>
    %184 = vector.broadcast %12 : vector<1x96xf32> to vector<8x96xf32>
    %185 = arith.addf %183, %184 : vector<8x96xf32>
    %cst_63 = arith.constant dense<0.000000e+00> : vector<8x96xf32>
    %186 = tpu.matmul %154, %13, %cst_63 {dimension_numbers = #tpu.dot_dimension_numbers<[1], [0], [0], [1], [0, 0, 1, 1], [], []>} : vector<8x32xf32>, vector<32x96xf32>, vector<8x96xf32> -> vector<8x96xf32>
    %187 = vector.broadcast %14 : vector<1x96xf32> to vector<8x96xf32>
    %188 = arith.addf %186, %187 : vector<8x96xf32>
    %189 = vector.extract_strided_slice %185 {offsets = [0, 0], sizes = [8, 32], strides = [1, 1]} : vector<8x96xf32> to vector<8x32xf32>
    %190 = vector.extract_strided_slice %188 {offsets = [0, 0], sizes = [8, 32], strides = [1, 1]} : vector<8x96xf32> to vector<8x32xf32>
    %191 = arith.addf %189, %190 : vector<8x32xf32>
    %cst_64 = arith.constant 0.000000e+00 : f32
    %192 = vector.broadcast %cst_64 : f32 to vector<8x32xf32>
    %193 = arith.subf %192, %191 : vector<8x32xf32>
    %194 = math.exp %193 : vector<8x32xf32>
    %cst_65 = arith.constant 1.000000e+00 : f32
    %195 = vector.broadcast %cst_65 : f32 to vector<8x32xf32>
    %196 = arith.addf %195, %194 : vector<8x32xf32>
    %197 = tpu.reciprocal %196 {approx = true} : vector<8x32xf32> -> vector<8x32xf32>
    %198 = vector.extract_strided_slice %185 {offsets = [0, 32], sizes = [8, 32], strides = [1, 1]} : vector<8x96xf32> to vector<8x32xf32>
    %199 = vector.extract_strided_slice %188 {offsets = [0, 32], sizes = [8, 32], strides = [1, 1]} : vector<8x96xf32> to vector<8x32xf32>
    %200 = arith.addf %198, %199 : vector<8x32xf32>
    %cst_66 = arith.constant 0.000000e+00 : f32
    %201 = vector.broadcast %cst_66 : f32 to vector<8x32xf32>
    %202 = arith.subf %201, %200 : vector<8x32xf32>
    %203 = math.exp %202 : vector<8x32xf32>
    %cst_67 = arith.constant 1.000000e+00 : f32
    %204 = vector.broadcast %cst_67 : f32 to vector<8x32xf32>
    %205 = arith.addf %204, %203 : vector<8x32xf32>
    %206 = tpu.reciprocal %205 {approx = true} : vector<8x32xf32> -> vector<8x32xf32>
    %207 = vector.extract_strided_slice %185 {offsets = [0, 64], sizes = [8, 32], strides = [1, 1]} : vector<8x96xf32> to vector<8x32xf32>
    %208 = vector.extract_strided_slice %188 {offsets = [0, 64], sizes = [8, 32], strides = [1, 1]} : vector<8x96xf32> to vector<8x32xf32>
    %209 = arith.mulf %197, %208 : vector<8x32xf32>
    %210 = arith.addf %207, %209 : vector<8x32xf32>
    %211 = math.tanh %210 : vector<8x32xf32>
    %cst_68 = arith.constant 1.000000e+00 : f32
    %212 = vector.broadcast %cst_68 : f32 to vector<8x32xf32>
    %213 = arith.subf %212, %206 : vector<8x32xf32>
    %214 = arith.mulf %213, %211 : vector<8x32xf32>
    %215 = arith.mulf %206, %154 : vector<8x32xf32>
    %216 = arith.addf %214, %215 : vector<8x32xf32>
    %217 = tpu.concatenate %216, %30 in 1 : vector<8x32xf32>, vector<8x32xf32> -> vector<8x64xf32>
    %cst_69 = arith.constant dense<0.000000e+00> : vector<8x64xf32>
    %218 = tpu.matmul %217, %15, %cst_69 {dimension_numbers = #tpu.dot_dimension_numbers<[1], [0], [0], [1], [0, 0, 1, 1], [], []>} : vector<8x64xf32>, vector<64x64xf32>, vector<8x64xf32> -> vector<8x64xf32>
    %219 = vector.broadcast %16 : vector<1x64xf32> to vector<8x64xf32>
    %220 = arith.addf %218, %219 : vector<8x64xf32>
    %cst_70 = arith.constant 0.000000e+00 : f32
    %221 = vector.broadcast %cst_70 : f32 to vector<8x64xf32>
    %222 = arith.subf %221, %220 : vector<8x64xf32>
    %223 = math.exp %222 : vector<8x64xf32>
    %cst_71 = arith.constant 1.000000e+00 : f32
    %224 = vector.broadcast %cst_71 : f32 to vector<8x64xf32>
    %225 = arith.addf %224, %223 : vector<8x64xf32>
    %226 = tpu.reciprocal %225 {approx = true} : vector<8x64xf32> -> vector<8x64xf32>
    %cst_72 = arith.constant dense<0.000000e+00> : vector<8x256xf32>
    %227 = tpu.matmul %226, %17, %cst_72 {dimension_numbers = #tpu.dot_dimension_numbers<[1], [0], [0], [1], [0, 0, 1, 1], [], []>} : vector<8x64xf32>, vector<64x256xf32>, vector<8x256xf32> -> vector<8x256xf32>
    %228 = vector.broadcast %18 : vector<1x256xf32> to vector<8x256xf32>
    %229 = arith.addf %227, %228 : vector<8x256xf32>
    %230 = vector.extract_strided_slice %229 {offsets = [0, 0], sizes = [8, 128], strides = [1, 1]} : vector<8x256xf32> to vector<8x128xf32>
    %cst_73 = arith.constant 0.000000e+00 : f32
    %231 = vector.broadcast %cst_73 : f32 to vector<8x128xf32>
    %232 = arith.subf %231, %230 : vector<8x128xf32>
    %233 = math.exp %232 : vector<8x128xf32>
    %cst_74 = arith.constant 1.000000e+00 : f32
    %234 = vector.broadcast %cst_74 : f32 to vector<8x128xf32>
    %235 = arith.addf %234, %233 : vector<8x128xf32>
    %236 = tpu.reciprocal %235 {approx = true} : vector<8x128xf32> -> vector<8x128xf32>
    %237 = vector.extract_strided_slice %229 {offsets = [0, 128], sizes = [8, 128], strides = [1, 1]} : vector<8x256xf32> to vector<8x128xf32>
    %238 = arith.mulf %236, %237 : vector<8x128xf32>
    %cst_75 = arith.constant dense<0.000000e+00> : vector<8x128xf32>
    %239 = tpu.matmul %6, %238, %cst_75 {dimension_numbers = #tpu.dot_dimension_numbers<[1], [0], [0], [1], [0, 0, 1, 1], [], []>} : vector<8x8xf32>, vector<8x128xf32>, vector<8x128xf32> -> vector<8x128xf32>
    %c0_76 = arith.constant 0 : index
    %c0_77 = arith.constant 0 : index
    %240 = vector.load %arg18[%c0_76, %c0_77] : memref<8x128xf32, #tpu.memory_space<vmem>>, vector<8x128xf32>
    tpu.vector_store %arg18[%c0_76, %c0_77], %239 {strides = array<i32>} : memref<8x128xf32, #tpu.memory_space<vmem>>, vector<8x128xf32>,
    return
  }
}

</mosaic_0001>

<llo_original>
// kernel: ggnn_forward.1
$region0: #{ggnn_forward.1}
  #allocation0 [shape = 'u32[]', space=smem, size = 0x4, offset = 0x4, fixed_abs, tag = 'smem constant byte address 0x4 - core index']
  #allocation1 [shape = 'u32[144,128]{1,0:T(1,128)}', space=vmem, size = 0x12000, scoped, tag = 'internal scratch']
  %s0 = inlined_call_operand.vmem [shape: f32[8,16], index: 0, kind: input, shape index: {}]
  %s1 = inlined_call_operand.vmem [shape: bf16[16,8], index: 1, kind: input, shape index: {}]
  %s2 = inlined_call_operand.vmem [shape: bf16[8,16], index: 2, kind: input, shape index: {}]
  %s3 = inlined_call_operand.vmem [shape: f32[8,1], index: 3, kind: input, shape index: {}]
  %s4 = inlined_call_operand.vmem [shape: f32[16,5], index: 4, kind: input, shape index: {}]
  %s5 = inlined_call_operand.vmem [shape: bf16[8,8], index: 5, kind: input, shape index: {}]
  %s6 = inlined_call_operand.vmem [shape: f32[16,32], index: 6, kind: input, shape index: {}]
  %s7 = inlined_call_operand.vmem [shape: f32[1,32], index: 7, kind: input, shape index: {}]
  %s8 = inlined_call_operand.vmem [shape: f32[32,160], index: 8, kind: input, shape index: {}]
  %s9 = inlined_call_operand.vmem [shape: f32[1,32], index: 9, kind: input, shape index: {}]
  %s10 = inlined_call_operand.vmem [shape: f32[32,96], index: 10, kind: input, shape index: {}]
  %s11 = inlined_call_operand.vmem [shape: f32[1,96], index: 11, kind: input, shape index: {}]
  %s12 = inlined_call_operand.vmem [shape: f32[32,96], index: 12, kind: input, shape index: {}]
  %s13 = inlined_call_operand.vmem [shape: f32[1,96], index: 13, kind: input, shape index: {}]
  %s14 = inlined_call_operand.vmem [shape: f32[64,64], index: 14, kind: input, shape index: {}]
  %s15 = inlined_call_operand.vmem [shape: f32[1,64], index: 15, kind: input, shape index: {}]
  %s16 = inlined_call_operand.vmem [shape: f32[64,256], index: 16, kind: input, shape index: {}]
  %s17 = inlined_call_operand.vmem [shape: f32[1,256], index: 17, kind: input, shape index: {}]
  %s18 = inlined_call_operand.vmem [shape: f32[8,128], index: 18, kind: output, shape index: {}]
  %s19 = sld [smem:[#allocation0]]
  $region82: #{ggnn_forward.1} parent=0
    _
  %s21 = ssub.s32 1, %s19
  %s22 = scalar_select 0, %s21, %s19
  // Predicated region
  $region2: #{ggnn_forward.1} parent=0 // pred_check
    _
  $region3: #{ggnn_forward.1} parent=0 // pred_check_branch
    %24 = sbr.rel (0) target = $region5
  $region4: #{ggnn_forward.1} parent=0 // pred_region
    _
  $region5: #{ggnn_forward.1} parent=0 // pred_fallthru
    _
  // Predicated region
  $region6: #{ggnn_forward.1} parent=0 // pred_check
    _
  $region7: #{ggnn_forward.1} parent=0 // pred_check_branch
    %26 = sbr.rel (0) target = $region9
  $region8: #{ggnn_forward.1} parent=0 // pred_region
    _
  $region9: #{ggnn_forward.1} parent=0 // pred_fallthru
    _
  // Predicated region
  $region10: #{ggnn_forward.1} parent=0 // pred_check
    _
  $region11: #{ggnn_forward.1} parent=0 // pred_check_branch
    %28 = sbr.rel (0) target = $region13
  $region12: #{ggnn_forward.1} parent=0 // pred_region
    _
  $region13: #{ggnn_forward.1} parent=0 // pred_fallthru
    _
  // Predicated region
  $region14: #{ggnn_forward.1} parent=0 // pred_check
    _
  $region15: #{ggnn_forward.1} parent=0 // pred_check_branch
    %30 = sbr.rel (0) target = $region17
  $region16: #{ggnn_forward.1} parent=0 // pred_region
    _
  $region17: #{ggnn_forward.1} parent=0 // pred_fallthru
    _
  // Predicated region
  $region18: #{ggnn_forward.1} parent=0 // pred_check
    _
  $region19: #{ggnn_forward.1} parent=0 // pred_check_branch
    %32 = sbr.rel (0) target = $region21
  $region20: #{ggnn_forward.1} parent=0 // pred_region
    _
  $region21: #{ggnn_forward.1} parent=0 // pred_fallthru
    _
  // Predicated region
  $region22: #{ggnn_forward.1} parent=0 // pred_check
    _
  $region23: #{ggnn_forward.1} parent=0 // pred_check_branch
    %34 = sbr.rel (0) target = $region25
  $region24: #{ggnn_forward.1} parent=0 // pred_region
    _
  $region25: #{ggnn_forward.1} parent=0 // pred_fallthru
    _
  // Predicated region
  $region26: #{ggnn_forward.1} parent=0 // pred_check
    _
  $region27: #{ggnn_forward.1} parent=0 // pred_check_branch
    %36 = sbr.rel (0) target = $region29
  $region28: #{ggnn_forward.1} parent=0 // pred_region
    _
  $region29: #{ggnn_forward.1} parent=0 // pred_fallthru
    _
  // Predicated region
  $region30: #{ggnn_forward.1} parent=0 // pred_check
    _
  $region31: #{ggnn_forward.1} parent=0 // pred_check_branch
    %38 = sbr.rel (0) target = $region33
  $region32: #{ggnn_forward.1} parent=0 // pred_region
    _
  $region33: #{ggnn_forward.1} parent=0 // pred_fallthru
    _
  // Predicated region
  $region34: #{ggnn_forward.1} parent=0 // pred_check
    _
  $region35: #{ggnn_forward.1} parent=0 // pred_check_branch
    %40 = sbr.rel (0) target = $region37
  $region36: #{ggnn_forward.1} parent=0 // pred_region
    _
  $region37: #{ggnn_forward.1} parent=0 // pred_fallthru
    _
  // Predicated region
  $region38: #{ggnn_forward.1} parent=0 // pred_check
    _
  $region39: #{ggnn_forward.1} parent=0 // pred_check_branch
    %42 = sbr.rel (0) target = $region41
  $region40: #{ggnn_forward.1} parent=0 // pred_region
    _
  $region41: #{ggnn_forward.1} parent=0 // pred_fallthru
    _
  // Predicated region
  $region42: #{ggnn_forward.1} parent=0 // pred_check
    _
  $region43: #{ggnn_forward.1} parent=0 // pred_check_branch
    %44 = sbr.rel (0) target = $region45
  $region44: #{ggnn_forward.1} parent=0 // pred_region
    _
  $region45: #{ggnn_forward.1} parent=0 // pred_fallthru
    _
  // Predicated region
  $region46: #{ggnn_forward.1} parent=0 // pred_check
    _
  $region47: #{ggnn_forward.1} parent=0 // pred_check_branch
    %46 = sbr.rel (0) target = $region49
  $region48: #{ggnn_forward.1} parent=0 // pred_region
    _
  $region49: #{ggnn_forward.1} parent=0 // pred_fallthru
    _
  // Predicated region
  $region50: #{ggnn_forward.1} parent=0 // pred_check
    _
  $region51: #{ggnn_forward.1} parent=0 // pred_check_branch
    %48 = sbr.rel (0) target = $region53
  $region52: #{ggnn_forward.1} parent=0 // pred_region
    _
  $region53: #{ggnn_forward.1} parent=0 // pred_fallthru
    _
  // Predicated region
  $region54: #{ggnn_forward.1} parent=0 // pred_check
    _
  $region55: #{ggnn_forward.1} parent=0 // pred_check_branch
    %50 = sbr.rel (0) target = $region57
  $region56: #{ggnn_forward.1} parent=0 // pred_region
    _
  $region57: #{ggnn_forward.1} parent=0 // pred_fallthru
    _
  // Predicated region
  $region58: #{ggnn_forward.1} parent=0 // pred_check
    _
  $region59: #{ggnn_forward.1} parent=0 // pred_check_branch
    %52 = sbr.rel (0) target = $region61
  $region60: #{ggnn_forward.1} parent=0 // pred_region
    _
  $region61: #{ggnn_forward.1} parent=0 // pred_fallthru
    _
  // Predicated region
  $region62: #{ggnn_forward.1} parent=0 // pred_check
    _
  $region63: #{ggnn_forward.1} parent=0 // pred_check_branch
    %54 = sbr.rel (0) target = $region65
  $region64: #{ggnn_forward.1} parent=0 // pred_region
    _
  $region65: #{ggnn_forward.1} parent=0 // pred_fallthru
    _
  // Predicated region
  $region66: #{ggnn_forward.1} parent=0 // pred_check
    _
  $region67: #{ggnn_forward.1} parent=0 // pred_check_branch
    %56 = sbr.rel (0) target = $region69
  $region68: #{ggnn_forward.1} parent=0 // pred_region
    _
  $region69: #{ggnn_forward.1} parent=0 // pred_fallthru
    _
  // Predicated region
  $region70: #{ggnn_forward.1} parent=0 // pred_check
    _
  $region71: #{ggnn_forward.1} parent=0 // pred_check_branch
    %58 = sbr.rel (0) target = $region73
  $region72: #{ggnn_forward.1} parent=0 // pred_region
    _
  $region73: #{ggnn_forward.1} parent=0 // pred_fallthru
    _
  %v59 = vld [vmem:[%s0] sm:$0xff]
  %v60 = vld [vmem:[%s1] sm:$0xf]
  %v61 = vld [vmem:[%s1 + $0x4] sm:$0xf]
  %v62 = vunpack.c.l.bf16 %v60
  %v63 = vunpack.c.l.bf16 %v61
  %v64 = vld [vmem:[%s2] sm:$0xf]
  %v65 = vunpack.c.l.bf16 %v64
  %v66 = vld [vmem:[%s5] sm:$0xf]
  %v67 = vunpack.c.l.bf16 %v66
  %v68 = vld [vmem:[%s3] sm:$0xff]
  %v69 = vld [vmem:[%s4] sm:$0xff]
  %v70 = vld [vmem:[%s4 + $0x8] sm:$0xff]
  %v71 = vld [vmem:[%s8] sm:$0xff]
  %v72 = vld [vmem:[%s8 + $0x8] sm:$0xff]
  %v73 = vld [vmem:[%s8 + $0x10] sm:$0xff]
  %v74 = vld [vmem:[%s8 + $0x18] sm:$0xff]
  %v75 = vld [vmem:[%s8 + $0x20] sm:$0xff]
  %v76 = vld [vmem:[%s8 + $0x28] sm:$0xff]
  %v77 = vld [vmem:[%s8 + $0x30] sm:$0xff]
  %v78 = vld [vmem:[%s8 + $0x38] sm:$0xff]
  %v79 = vld [vmem:[%s9] sm:$0x1]
  %v80 = vld [vmem:[%s10] sm:$0xff]
  %v81 = vld [vmem:[%s10 + $0x8] sm:$0xff]
  %v82 = vld [vmem:[%s10 + $0x10] sm:$0xff]
  %v83 = vld [vmem:[%s10 + $0x18] sm:$0xff]
  %v84 = vld [vmem:[%s11] sm:$0x1]
  %v85 = vld [vmem:[%s12] sm:$0xff]
  %v86 = vld [vmem:[%s12 + $0x8] sm:$0xff]
  %v87 = vld [vmem:[%s12 + $0x10] sm:$0xff]
  %v88 = vld [vmem:[%s12 + $0x18] sm:$0xff]
  %v89 = vld [vmem:[%s13] sm:$0x1]
  %v90 = vld [vmem:[%s14] sm:$0xff]
  %v91 = vld [vmem:[%s14 + $0x8] sm:$0xff]
  %v92 = vld [vmem:[%s14 + $0x10] sm:$0xff]
  %v93 = vld [vmem:[%s14 + $0x18] sm:$0xff]
  %v94 = vld [vmem:[%s14 + $0x20] sm:$0xff]
  %v95 = vld [vmem:[%s14 + $0x28] sm:$0xff]
  %v96 = vld [vmem:[%s14 + $0x30] sm:$0xff]
  %v97 = vld [vmem:[%s14 + $0x38] sm:$0xff]
  %v98 = vld [vmem:[%s15] sm:$0x1]
  %v99 = vld [vmem:[%s16] sm:$0xff]
  %v100 = vld [vmem:[%s16 + $0x8] sm:$0xff]
  %v101 = vld [vmem:[%s16 + $0x10] sm:$0xff]
  %v102 = vld [vmem:[%s16 + $0x18] sm:$0xff]
  %v103 = vld [vmem:[%s16 + $0x20] sm:$0xff]
  %v104 = vld [vmem:[%s16 + $0x28] sm:$0xff]
  %v105 = vld [vmem:[%s16 + $0x30] sm:$0xff]
  %v106 = vld [vmem:[%s16 + $0x38] sm:$0xff]
  %v107 = vld [vmem:[%s16 + $0x40] sm:$0xff]
  %v108 = vld [vmem:[%s16 + $0x48] sm:$0xff]
  %v109 = vld [vmem:[%s16 + $0x50] sm:$0xff]
  %v110 = vld [vmem:[%s16 + $0x58] sm:$0xff]
  %v111 = vld [vmem:[%s16 + $0x60] sm:$0xff]
  %v112 = vld [vmem:[%s16 + $0x68] sm:$0xff]
  %v113 = vld [vmem:[%s16 + $0x70] sm:$0xff]
  %v114 = vld [vmem:[%s16 + $0x78] sm:$0xff]
  %v115 = vld [vmem:[%s17] sm:$0x3]
  %v116 = vld [vmem:[%s6] sm:$0xff]
  %v117 = vld [vmem:[%s6 + $0x8] sm:$0xff]
  %v118 = vld [vmem:[%s7] sm:$0x1]
  %v120 = vlaneseq
  %v121 = vshrl.u32 %v120, 7
  %v122 = vsub.s32 0, %v121
  %v123 = vrot.slane %v118, %v122
  %vm125 = vcmask 130048
  %v127 = vsel %vm125, %v59, 0
  %129 = vmatprep.subr.mxu0 0.0
  %130 = vmatpush1.msra.mxu0 %v116
  %131 = vmatprep.subr.mxu0 0.0
  %132 = vmatpush1.msra.mxu0 %v117
  %133 = vmatprep.subr.mxu0 0.0
  %134 = vmatpush1.msra.mxu0 0.0
  %135 = vmatprep.subr.mxu0 0.0
  %136 = vmatpush1.msra.mxu0 0.0
  %137 = vmatprep.subr.mxu0 0.0
  %138 = vmatpush1.msra.mxu0 0.0
  %139 = vmatprep.subr.mxu0 0.0
  %140 = vmatpush1.msra.mxu0 0.0
  %141 = vmatprep.subr.mxu0 0.0
  %142 = vmatpush1.msra.mxu0 0.0
  %143 = vmatprep.subr.mxu0 0.0
  %144 = vmatpush1.msra.mxu0 0.0
  %145 = vmatprep.subr.mxu0 0.0
  %146 = vmatpush1.msra.mxu0 0.0
  %147 = vmatprep.subr.mxu0 0.0
  %148 = vmatpush1.msra.mxu0 0.0
  %149 = vmatprep.subr.mxu0 0.0
  %150 = vmatpush1.msra.mxu0 0.0
  %151 = vmatprep.subr.mxu0 0.0
  %152 = vmatpush1.msra.mxu0 0.0
  %153 = vmatprep.subr.mxu0 0.0
  %154 = vmatpush1.msra.mxu0 0.0
  %155 = vmatprep.subr.mxu0 0.0
  %156 = vmatpush1.msra.mxu0 0.0
  %157 = vmatprep.subr.mxu0 0.0
  %158 = vmatpush1.msra.mxu0 0.0
  %159 = vmatprep.subr.mxu0 0.0
  %160 = vmatpush1.msra.mxu0 0.0
  %161 = vmatprep.subr.mxu0 0.0
  %162 = vmatpush1.msra.mxu0 0.0
  %163 = vmatprep.subr.mxu0 0.0
  %164 = vmatpush1.msra.mxu0 0.0
  %165 = vmatprep.subr.mxu0 0.0
  %166 = vmatpush1.msra.mxu0 0.0
  %167 = vmatprep.subr.mxu0 0.0
  %168 = vmatpush1.msra.mxu0 0.0
  %169 = vmatprep.subr.mxu0 0.0
  %170 = vmatpush1.msra.mxu0 0.0
  %171 = vmatprep.subr.mxu0 0.0
  %172 = vmatpush1.msra.mxu0 0.0
  %173 = vmatprep.subr.mxu0 0.0
  %174 = vmatpush1.msra.mxu0 0.0
  %175 = vmatprep.subr.mxu0 0.0
  %176 = vmatpush1.msra.mxu0 0.0
  %177 = vmatprep.subr.mxu0 0.0
  %178 = vmatpush1.msra.mxu0 0.0
  %179 = vmatprep.subr.mxu0 0.0
  %180 = vmatpush1.msra.mxu0 0.0
  %181 = vmatprep.subr.mxu0 0.0
  %182 = vmatpush1.msra.mxu0 0.0
  %183 = vmatprep.subr.mxu0 0.0
  %184 = vmatpush1.msra.mxu0 0.0
  %185 = vmatprep.subr.mxu0 0.0
  %186 = vmatpush1.msra.mxu0 0.0
  %187 = vmatprep.subr.mxu0 0.0
  %188 = vmatpush1.msra.mxu0 0.0
  %189 = vmatprep.subr.mxu0 0.0
  %190 = vmatpush1.msra.mxu0 0.0
  %191 = vmatprep.subr.mxu0 0.0
  %192 = vmatpush1.msra.mxu0 0.0
  %193 = vmatprep.mubr.f32.mxu0 0.0
  %194 = vmatmul.mubr.f32.gmra.mrb[0].mxu0 %v127
  %v195 = vpop.f32.mrb[0].mxu0
  %v196 = vadd.f32 %v123, %v195
  %v197 = vpop.f32.mrb[0].mxu0
  %198 = vdwg.mxu0
  %v199 = vmax.f32 %v196, 0.0
  %vm200 = vcmask 64512
  %v202 = vsel %vm200, %v62, 0
  %v205 = vsel %vm200, %v63, 0
  %207 = vmatprep.subr.mxu0 0.0
  %208 = vmatpush1.msra.mxu0 %v199
  %209 = vmatprep.subr.mxu0 0.0
  %210 = vmatpush1.msra.mxu0 0.0
  %211 = vmatprep.subr.mxu0 0.0
  %212 = vmatpush1.msra.mxu0 0.0
  %213 = vmatprep.subr.mxu0 0.0
  %214 = vmatpush1.msra.mxu0 0.0
  %215 = vmatprep.subr.mxu0 0.0
  %216 = vmatpush1.msra.mxu0 0.0
  %217 = vmatprep.subr.mxu0 0.0
  %218 = vmatpush1.msra.mxu0 0.0
  %219 = vmatprep.subr.mxu0 0.0
  %220 = vmatpush1.msra.mxu0 0.0
  %221 = vmatprep.subr.mxu0 0.0
  %222 = vmatpush1.msra.mxu0 0.0
  %223 = vmatprep.subr.mxu0 0.0
  %224 = vmatpush1.msra.mxu0 0.0
  %225 = vmatprep.subr.mxu0 0.0
  %226 = vmatpush1.msra.mxu0 0.0
  %227 = vmatprep.subr.mxu0 0.0
  %228 = vmatpush1.msra.mxu0 0.0
  %229 = vmatprep.subr.mxu0 0.0
  %230 = vmatpush1.msra.mxu0 0.0
  %231 = vmatprep.subr.mxu0 0.0
  %232 = vmatpush1.msra.mxu0 0.0
  %233 = vmatprep.subr.mxu0 0.0
  %234 = vmatpush1.msra.mxu0 0.0
  %235 = vmatprep.subr.mxu0 0.0
  %236 = vmatpush1.msra.mxu0 0.0
  %237 = vmatprep.subr.mxu0 0.0
  %238 = vmatpush1.msra.mxu0 0.0
  %239 = vmatprep.subr.mxu0 0.0
  %240 = vmatpush1.msra.mxu0 0.0
  %241 = vmatprep.subr.mxu0 0.0
  %242 = vmatpush1.msra.mxu0 0.0
  %243 = vmatprep.subr.mxu0 0.0
  %244 = vmatpush1.msra.mxu0 0.0
  %245 = vmatprep.subr.mxu0 0.0
  %246 = vmatpush1.msra.mxu0 0.0
  %247 = vmatprep.subr.mxu0 0.0
  %248 = vmatpush1.msra.mxu0 0.0
  %249 = vmatprep.subr.mxu0 0.0
  %250 = vmatpush1.msra.mxu0 0.0
  %251 = vmatprep.subr.mxu0 0.0
  %252 = vmatpush1.msra.mxu0 0.0
  %253 = vmatprep.subr.mxu0 0.0
  %254 = vmatpush1.msra.mxu0 0.0
  %255 = vmatprep.subr.mxu0 0.0
  %256 = vmatpush1.msra.mxu0 0.0
  %257 = vmatprep.subr.mxu0 0.0
  %258 = vmatpush1.msra.mxu0 0.0
  %259 = vmatprep.subr.mxu0 0.0
  %260 = vmatpush1.msra.mxu0 0.0
  %261 = vmatprep.subr.mxu0 0.0
  %262 = vmatpush1.msra.mxu0 0.0
  %263 = vmatprep.subr.mxu0 0.0
  %264 = vmatpush1.msra.mxu0 0.0
  %265 = vmatprep.subr.mxu0 0.0
  %266 = vmatpush1.msra.mxu0 0.0
  %267 = vmatprep.subr.mxu0 0.0
  %268 = vmatpush1.msra.mxu0 0.0
  %269 = vmatprep.subr.mxu0 0.0
  %270 = vmatpush1.msra.mxu0 0.0
  %271 = vmatprep.mubr.f32.mxu0 0.0
  %272 = vmatmul.mubr.f32.gmra.mrb[0].mxu0 %v202
  %v273 = vpop.f32.mrb[0].mxu0
  %v274 = vadd.f32 0.0, %v273
  %v275 = vpop.f32.mrb[0].mxu0
  %276 = vmatprep.mubr.f32.mxu0 0.0
  %277 = vmatmul.mubr.f32.gmra.mrb[0].mxu0 %v205
  %v278 = vpop.f32.mrb[0].mxu0
  %v279 = vadd.f32 0.0, %v278
  %v280 = vpop.f32.mrb[0].mxu0
  %281 = vdwg.mxu0
  %vm282 = vcmask 261120
  %v284 = vsel %vm282, %v274, 0
  %v287 = vsel %vm282, %v279, 0
  %289 = vmatprep.subr.mxu0 %v72
  %290 = vmatpush1.msra.mxu0 %v71
  %291 = vmatprep.subr.mxu0 %v74
  %292 = vmatpush1.msra.mxu0 %v73
  %293 = vmatprep.subr.mxu0 %v76
  %294 = vmatpush1.msra.mxu0 %v75
  %295 = vmatprep.subr.mxu0 %v78
  %296 = vmatpush1.msra.mxu0 %v77
  %297 = vmatprep.subr.mxu0 0.0
  %298 = vmatpush1.msra.mxu0 0.0
  %299 = vmatprep.subr.mxu0 0.0
  %300 = vmatpush1.msra.mxu0 0.0
  %301 = vmatprep.subr.mxu0 0.0
  %302 = vmatpush1.msra.mxu0 0.0
  %303 = vmatprep.subr.mxu0 0.0
  %304 = vmatpush1.msra.mxu0 0.0
  %305 = vmatprep.subr.mxu0 0.0
  %306 = vmatpush1.msra.mxu0 0.0
  %307 = vmatprep.subr.mxu0 0.0
  %308 = vmatpush1.msra.mxu0 0.0
  %309 = vmatprep.subr.mxu0 0.0
  %310 = vmatpush1.msra.mxu0 0.0
  %311 = vmatprep.subr.mxu0 0.0
  %312 = vmatpush1.msra.mxu0 0.0
  %313 = vmatprep.subr.mxu0 0.0
  %314 = vmatpush1.msra.mxu0 0.0
  %315 = vmatprep.subr.mxu0 0.0
  %316 = vmatpush1.msra.mxu0 0.0
  %317 = vmatprep.subr.mxu0 0.0
  %318 = vmatpush1.msra.mxu0 0.0
  %319 = vmatprep.subr.mxu0 0.0
  %320 = vmatpush1.msra.mxu0 0.0
  %321 = vmatprep.subr.mxu0 0.0
  %322 = vmatpush1.msra.mxu0 0.0
  %323 = vmatprep.subr.mxu0 0.0
  %324 = vmatpush1.msra.mxu0 0.0
  %325 = vmatprep.subr.mxu0 0.0
  %326 = vmatpush1.msra.mxu0 0.0
  %327 = vmatprep.subr.mxu0 0.0
  %328 = vmatpush1.msra.mxu0 0.0
  %329 = vmatprep.subr.mxu0 0.0
  %330 = vmatpush1.msra.mxu0 0.0
  %331 = vmatprep.subr.mxu0 0.0
  %332 = vmatpush1.msra.mxu0 0.0
  %333 = vmatprep.subr.mxu0 0.0
  %334 = vmatpush1.msra.mxu0 0.0
  %335 = vmatprep.subr.mxu0 0.0
  %336 = vmatpush1.msra.mxu0 0.0
  %337 = vmatprep.subr.mxu0 0.0
  %338 = vmatpush1.msra.mxu0 0.0
  %339 = vmatprep.subr.mxu0 0.0
  %340 = vmatpush1.msra.mxu0 0.0
  %341 = vmatprep.subr.mxu0 0.0
  %342 = vmatpush1.msra.mxu0 0.0
  %343 = vmatprep.subr.mxu0 0.0
  %344 = vmatpush1.msra.mxu0 0.0
  %345 = vmatprep.subr.mxu0 0.0
  %346 = vmatpush1.msra.mxu0 0.0
  %347 = vmatprep.subr.mxu0 0.0
  %348 = vmatpush1.msra.mxu0 0.0
  %349 = vmatprep.subr.mxu0 0.0
  %350 = vmatpush1.msra.mxu0 0.0
  %351 = vmatprep.subr.mxu0 0.0
  %352 = vmatpush1.msra.mxu0 0.0
  %353 = vmatprep.mubr.f32.mxu0 0.0
  %354 = vmatmul.mubr.f32.gmra.mrb[0].mxu0 %v284
  %v355 = vpop.f32.mrb[0].mxu0
  %v356 = vadd.f32 0.0, %v355
  %v357 = vpop.f32.mrb[0].mxu0
  %v358 = vadd.f32 0.0, %v357
  %359 = vmatprep.mubr.f32.mxu0 0.0
  %360 = vmatmul.mubr.f32.gmra.mrb[0].mxu0 %v287
  %v361 = vpop.f32.mrb[0].mxu0
  %v362 = vadd.f32 0.0, %v361
  %v363 = vpop.f32.mrb[0].mxu0
  %v364 = vadd.f32 0.0, %v363
  %365 = vdwg.mxu0
  %367 = vset.pattern.permute.xlu0 0
  %368 = vperm.xlu0 %367, %v69
  %v369 = vpop.permute.xlu0 %368
  %372 = vset.pattern.permute.xlu0 0
  %373 = vperm.xlu0 %372, %v70
  %v374 = vpop.permute.xlu0 %373
  %v376 = vmul.f32 %v369, %v356
  %v377 = vmul.f32 %v374, %v362
  %378 = vset.pattern.permute.xlu0 1
  %379 = vperm.xlu0 %378, %v69
  %v380 = vpop.permute.xlu0 %379
  %382 = vset.pattern.permute.xlu0 1
  %383 = vperm.xlu0 %382, %v70
  %v384 = vpop.permute.xlu0 %383
  %v386 = vmul.f32 %v380, %v356
  %v387 = vmul.f32 %v384, %v362
  %390 = vrot.lane.b32.xlu0 %v386, 96
  %v391 = vpop.permute.xlu0 %390
  %392 = vrot.lane.b32.xlu0 %v387, 96
  %v393 = vpop.permute.xlu0 %392
  %v396 = vadd.f32 %v376, %v391
  %v397 = vadd.f32 %v377, %v393
  %398 = vset.pattern.permute.xlu0 2
  %399 = vperm.xlu0 %398, %v69
  %v400 = vpop.permute.xlu0 %399
  %402 = vset.pattern.permute.xlu0 2
  %403 = vperm.xlu0 %402, %v70
  %v404 = vpop.permute.xlu0 %403
  %v406 = vmul.f32 %v400, %v356
  %v407 = vmul.f32 %v404, %v362
  %410 = vrot.lane.b32.xlu0 %v406, 64
  %v411 = vpop.permute.xlu0 %410
  %412 = vrot.lane.b32.xlu0 %v407, 64
  %v413 = vpop.permute.xlu0 %412
  %v416 = vadd.f32 %v396, %v411
  %v417 = vadd.f32 %v397, %v413
  %418 = vset.pattern.permute.xlu0 3
  %419 = vperm.xlu0 %418, %v69
  %v420 = vpop.permute.xlu0 %419
  %422 = vset.pattern.permute.xlu0 3
  %423 = vperm.xlu0 %422, %v70
  %v424 = vpop.permute.xlu0 %423
  %v426 = vmul.f32 %v420, %v356
  %v427 = vmul.f32 %v424, %v362
  %430 = vrot.lane.b32.xlu0 %v426, 32
  %v431 = vpop.permute.xlu0 %430
  %432 = vrot.lane.b32.xlu0 %v427, 32
  %v433 = vpop.permute.xlu0 %432
  %v436 = vadd.f32 %v416, %v431
  %v437 = vadd.f32 %v417, %v433
  %438 = vset.pattern.permute.xlu0 4
  %439 = vperm.xlu0 %438, %v69
  %v440 = vpop.permute.xlu0 %439
  %442 = vset.pattern.permute.xlu0 4
  %443 = vperm.xlu0 %442, %v70
  %v444 = vpop.permute.xlu0 %443
  %v446 = vmul.f32 %v440, %v358
  %v447 = vmul.f32 %v444, %v364
  %v448 = vadd.f32 %v436, %v446
  %v449 = vadd.f32 %v437, %v447
  %v451 = vsel %vm125, %v65, 0
  %453 = vmatprep.subr.mxu0 0.0
  %454 = vmatpush1.msra.mxu0 %v448
  %455 = vmatprep.subr.mxu0 0.0
  %456 = vmatpush1.msra.mxu0 %v449
  %457 = vmatprep.subr.mxu0 0.0
  %458 = vmatpush1.msra.mxu0 0.0
  %459 = vmatprep.subr.mxu0 0.0
  %460 = vmatpush1.msra.mxu0 0.0
  %461 = vmatprep.subr.mxu0 0.0
  %462 = vmatpush1.msra.mxu0 0.0
  %463 = vmatprep.subr.mxu0 0.0
  %464 = vmatpush1.msra.mxu0 0.0
  %465 = vmatprep.subr.mxu0 0.0
  %466 = vmatpush1.msra.mxu0 0.0
  %467 = vmatprep.subr.mxu0 0.0
  %468 = vmatpush1.msra.mxu0 0.0
  %469 = vmatprep.subr.mxu0 0.0
  %470 = vmatpush1.msra.mxu0 0.0
  %471 = vmatprep.subr.mxu0 0.0
  %472 = vmatpush1.msra.mxu0 0.0
  %473 = vmatprep.subr.mxu0 0.0
  %474 = vmatpush1.msra.mxu0 0.0
  %475 = vmatprep.subr.mxu0 0.0
  %476 = vmatpush1.msra.mxu0 0.0
  %477 = vmatprep.subr.mxu0 0.0
  %478 = vmatpush1.msra.mxu0 0.0
  %479 = vmatprep.subr.mxu0 0.0
  %480 = vmatpush1.msra.mxu0 0.0
  %481 = vmatprep.subr.mxu0 0.0
  %482 = vmatpush1.msra.mxu0 0.0
  %483 = vmatprep.subr.mxu0 0.0
  %484 = vmatpush1.msra.mxu0 0.0
  %485 = vmatprep.subr.mxu0 0.0
  %486 = vmatpush1.msra.mxu0 0.0
  %487 = vmatprep.subr.mxu0 0.0
  %488 = vmatpush1.msra.mxu0 0.0
  %489 = vmatprep.subr.mxu0 0.0
  %490 = vmatpush1.msra.mxu0 0.0
  %491 = vmatprep.subr.mxu0 0.0
  %492 = vmatpush1.msra.mxu0 0.0
  %493 = vmatprep.subr.mxu0 0.0
  %494 = vmatpush1.msra.mxu0 0.0
  %495 = vmatprep.subr.mxu0 0.0
  %496 = vmatpush1.msra.mxu0 0.0
  %497 = vmatprep.subr.mxu0 0.0
  %498 = vmatpush1.msra.mxu0 0.0
  %499 = vmatprep.subr.mxu0 0.0
  %500 = vmatpush1.msra.mxu0 0.0
  %501 = vmatprep.subr.mxu0 0.0
  %502 = vmatpush1.msra.mxu0 0.0
  %503 = vmatprep.subr.mxu0 0.0
  %504 = vmatpush1.msra.mxu0 0.0
  %505 = vmatprep.subr.mxu0 0.0
  %506 = vmatpush1.msra.mxu0 0.0
  %507 = vmatprep.subr.mxu0 0.0
  %508 = vmatpush1.msra.mxu0 0.0
  %509 = vmatprep.subr.mxu0 0.0
  %510 = vmatpush1.msra.mxu0 0.0
  %511 = vmatprep.subr.mxu0 0.0
  %512 = vmatpush1.msra.mxu0 0.0
  %513 = vmatprep.subr.mxu0 0.0
  %514 = vmatpush1.msra.mxu0 0.0
  %515 = vmatprep.subr.mxu0 0.0
  %516 = vmatpush1.msra.mxu0 0.0
  %517 = vmatprep.mubr.f32.mxu0 0.0
  %518 = vmatmul.mubr.f32.gmra.mrb[0].mxu0 %v451
  %v519 = vpop.f32.mrb[0].mxu0
  %v520 = vadd.f32 0.0, %v519
  %v521 = vpop.f32.mrb[0].mxu0
  %522 = vdwg.mxu0
  %524 = vset.pattern.permute.xlu0 0
  %525 = vperm.xlu0 %524, %v68
  %v526 = vpop.permute.xlu0 %525
  %v528 = vmul.f32 %v520, %v526
  %v530 = vlaneseq
  %v531 = vshrl.u32 %v530, 7
  %v532 = vsub.s32 0, %v531
  %v533 = vrot.slane %v79, %v532
  %v535 = vadd.f32 %v528, %v533
  %v536 = vmax.f32 %v535, 0.0
  %v538 = vlaneseq
  %v539 = vshrl.u32 %v538, 7
  %v540 = vsub.s32 0, %v539
  %v541 = vrot.slane %v84, %v540
  %v544 = vsel %vm282, %v536, 0
  %546 = vmatprep.subr.mxu0 0.0
  %547 = vmatpush1.msra.mxu0 %v80
  %548 = vmatprep.subr.mxu0 0.0
  %549 = vmatpush1.msra.mxu0 %v81
  %550 = vmatprep.subr.mxu0 0.0
  %551 = vmatpush1.msra.mxu0 %v82
  %552 = vmatprep.subr.mxu0 0.0
  %553 = vmatpush1.msra.mxu0 %v83
  %554 = vmatprep.subr.mxu0 0.0
  %555 = vmatpush1.msra.mxu0 0.0
  %556 = vmatprep.subr.mxu0 0.0
  %557 = vmatpush1.msra.mxu0 0.0
  %558 = vmatprep.subr.mxu0 0.0
  %559 = vmatpush1.msra.mxu0 0.0
  %560 = vmatprep.subr.mxu0 0.0
  %561 = vmatpush1.msra.mxu0 0.0
  %562 = vmatprep.subr.mxu0 0.0
  %563 = vmatpush1.msra.mxu0 0.0
  %564 = vmatprep.subr.mxu0 0.0
  %565 = vmatpush1.msra.mxu0 0.0
  %566 = vmatprep.subr.mxu0 0.0
  %567 = vmatpush1.msra.mxu0 0.0
  %568 = vmatprep.subr.mxu0 0.0
  %569 = vmatpush1.msra.mxu0 0.0
  %570 = vmatprep.subr.mxu0 0.0
  %571 = vmatpush1.msra.mxu0 0.0
  %572 = vmatprep.subr.mxu0 0.0
  %573 = vmatpush1.msra.mxu0 0.0
  %574 = vmatprep.subr.mxu0 0.0
  %575 = vmatpush1.msra.mxu0 0.0
  %576 = vmatprep.subr.mxu0 0.0
  %577 = vmatpush1.msra.mxu0 0.0
  %578 = vmatprep.subr.mxu0 0.0
  %579 = vmatpush1.msra.mxu0 0.0
  %580 = vmatprep.subr.mxu0 0.0
  %581 = vmatpush1.msra.mxu0 0.0
  %582 = vmatprep.subr.mxu0 0.0
  %583 = vmatpush1.msra.mxu0 0.0
  %584 = vmatprep.subr.mxu0 0.0
  %585 = vmatpush1.msra.mxu0 0.0
  %586 = vmatprep.subr.mxu0 0.0
  %587 = vmatpush1.msra.mxu0 0.0
  %588 = vmatprep.subr.mxu0 0.0
  %589 = vmatpush1.msra.mxu0 0.0
  %590 = vmatprep.subr.mxu0 0.0
  %591 = vmatpush1.msra.mxu0 0.0
  %592 = vmatprep.subr.mxu0 0.0
  %593 = vmatpush1.msra.mxu0 0.0
  %594 = vmatprep.subr.mxu0 0.0
  %595 = vmatpush1.msra.mxu0 0.0
  %596 = vmatprep.subr.mxu0 0.0
  %597 = vmatpush1.msra.mxu0 0.0
  %598 = vmatprep.subr.mxu0 0.0
  %599 = vmatpush1.msra.mxu0 0.0
  %600 = vmatprep.subr.mxu0 0.0
  %601 = vmatpush1.msra.mxu0 0.0
  %602 = vmatprep.subr.mxu0 0.0
  %603 = vmatpush1.msra.mxu0 0.0
  %604 = vmatprep.subr.mxu0 0.0
  %605 = vmatpush1.msra.mxu0 0.0
  %606 = vmatprep.subr.mxu0 0.0
  %607 = vmatpush1.msra.mxu0 0.0
  %608 = vmatprep.subr.mxu0 0.0
  %609 = vmatpush1.msra.mxu0 0.0
  %610 = vmatprep.mubr.f32.mxu0 0.0
  %611 = vmatmul.mubr.f32.gmra.mrb[0].mxu0 %v544
  %v612 = vpop.f32.mrb[0].mxu0
  %v613 = vadd.f32 %v541, %v612
  %v614 = vpop.f32.mrb[0].mxu0
  %615 = vdwg.mxu0
  %v617 = vlaneseq
  %v618 = vshrl.u32 %v617, 7
  %v619 = vsub.s32 0, %v618
  %v620 = vrot.slane %v89, %v619
  %v623 = vsel %vm282, %v199, 0
  %625 = vmatprep.subr.mxu0 0.0
  %626 = vmatpush1.msra.mxu0 %v85
  %627 = vmatprep.subr.mxu0 0.0
  %628 = vmatpush1.msra.mxu0 %v86
  %629 = vmatprep.subr.mxu0 0.0
  %630 = vmatpush1.msra.mxu0 %v87
  %631 = vmatprep.subr.mxu0 0.0
  %632 = vmatpush1.msra.mxu0 %v88
  %633 = vmatprep.subr.mxu0 0.0
  %634 = vmatpush1.msra.mxu0 0.0
  %635 = vmatprep.subr.mxu0 0.0
  %636 = vmatpush1.msra.mxu0 0.0
  %637 = vmatprep.subr.mxu0 0.0
  %638 = vmatpush1.msra.mxu0 0.0
  %639 = vmatprep.subr.mxu0 0.0
  %640 = vmatpush1.msra.mxu0 0.0
  %641 = vmatprep.subr.mxu0 0.0
  %642 = vmatpush1.msra.mxu0 0.0
  %643 = vmatprep.subr.mxu0 0.0
  %644 = vmatpush1.msra.mxu0 0.0
  %645 = vmatprep.subr.mxu0 0.0
  %646 = vmatpush1.msra.mxu0 0.0
  %647 = vmatprep.subr.mxu0 0.0
  %648 = vmatpush1.msra.mxu0 0.0
  %649 = vmatprep.subr.mxu0 0.0
  %650 = vmatpush1.msra.mxu0 0.0
  %651 = vmatprep.subr.mxu0 0.0
  %652 = vmatpush1.msra.mxu0 0.0
  %653 = vmatprep.subr.mxu0 0.0
  %654 = vmatpush1.msra.mxu0 0.0
  %655 = vmatprep.subr.mxu0 0.0
  %656 = vmatpush1.msra.mxu0 0.0
  %657 = vmatprep.subr.mxu0 0.0
  %658 = vmatpush1.msra.mxu0 0.0
  %659 = vmatprep.subr.mxu0 0.0
  %660 = vmatpush1.msra.mxu0 0.0
  %661 = vmatprep.subr.mxu0 0.0
  %662 = vmatpush1.msra.mxu0 0.0
  %663 = vmatprep.subr.mxu0 0.0
  %664 = vmatpush1.msra.mxu0 0.0
  %665 = vmatprep.subr.mxu0 0.0
  %666 = vmatpush1.msra.mxu0 0.0
  %667 = vmatprep.subr.mxu0 0.0
  %668 = vmatpush1.msra.mxu0 0.0
  %669 = vmatprep.subr.mxu0 0.0
  %670 = vmatpush1.msra.mxu0 0.0
  %671 = vmatprep.subr.mxu0 0.0
  %672 = vmatpush1.msra.mxu0 0.0
  %673 = vmatprep.subr.mxu0 0.0
  %674 = vmatpush1.msra.mxu0 0.0
  %675 = vmatprep.subr.mxu0 0.0
  %676 = vmatpush1.msra.mxu0 0.0
  %677 = vmatprep.subr.mxu0 0.0
  %678 = vmatpush1.msra.mxu0 0.0
  %679 = vmatprep.subr.mxu0 0.0
  %680 = vmatpush1.msra.mxu0 0.0
  %681 = vmatprep.subr.mxu0 0.0
  %682 = vmatpush1.msra.mxu0 0.0
  %683 = vmatprep.subr.mxu0 0.0
  %684 = vmatpush1.msra.mxu0 0.0
  %685 = vmatprep.subr.mxu0 0.0
  %686 = vmatpush1.msra.mxu0 0.0
  %687 = vmatprep.subr.mxu0 0.0
  %688 = vmatpush1.msra.mxu0 0.0
  %689 = vmatprep.mubr.f32.mxu0 0.0
  %690 = vmatmul.mubr.f32.gmra.mrb[0].mxu0 %v623
  %v691 = vpop.f32.mrb[0].mxu0
  %v692 = vadd.f32 %v620, %v691
  %v693 = vpop.f32.mrb[0].mxu0
  %694 = vdwg.mxu0
  %v695 = vadd.f32 %v613, %v692
  %v696 = vsub.f32 0.0, %v695
  %v697 = vmul.f32 %v696, 1.442695
  %v698 = vpow.pop %v697
  %v699 = vadd.f32 %v698, 1.0
  %v700 = vrcp.pop %v699
  %702 = vrot.lane.b32.xlu0 %v692, 64
  %v703 = vpop.permute.xlu0 %702
  %v705 = vmul.f32 %v700, %v703
  %707 = vrot.lane.b32.xlu0 %v705, 64
  %v708 = vpop.permute.xlu0 %707
  %v710 = vadd.f32 %v613, %v708
  %v711 = vtanh.pop %v710
  %v712 = vsub.f32 1.0, %v700
  %714 = vrot.lane.b32.xlu0 %v711, 96
  %v715 = vpop.permute.xlu0 %714
  %v717 = vmul.f32 %v712, %v715
  %718 = vrot.lane.b32.xlu0 %v199, 32
  %v719 = vpop.permute.xlu0 %718
  %v721 = vmul.f32 %v700, %v719
  %v722 = vadd.f32 %v717, %v721
  %724 = vrot.lane.b32.xlu0 %v722, 96
  %v725 = vpop.permute.xlu0 %724
  %727 = vmatprep.subr.mxu0 0.0
  %728 = vmatpush1.msra.mxu0 %v725
  %729 = vmatprep.subr.mxu0 0.0
  %730 = vmatpush1.msra.mxu0 0.0
  %731 = vmatprep.subr.mxu0 0.0
  %732 = vmatpush1.msra.mxu0 0.0
  %733 = vmatprep.subr.mxu0 0.0
  %734 = vmatpush1.msra.mxu0 0.0
  %735 = vmatprep.subr.mxu0 0.0
  %736 = vmatpush1.msra.mxu0 0.0
  %737 = vmatprep.subr.mxu0 0.0
  %738 = vmatpush1.msra.mxu0 0.0
  %739 = vmatprep.subr.mxu0 0.0
  %740 = vmatpush1.msra.mxu0 0.0
  %741 = vmatprep.subr.mxu0 0.0
  %742 = vmatpush1.msra.mxu0 0.0
  %743 = vmatprep.subr.mxu0 0.0
  %744 = vmatpush1.msra.mxu0 0.0
  %745 = vmatprep.subr.mxu0 0.0
  %746 = vmatpush1.msra.mxu0 0.0
  %747 = vmatprep.subr.mxu0 0.0
  %748 = vmatpush1.msra.mxu0 0.0
  %749 = vmatprep.subr.mxu0 0.0
  %750 = vmatpush1.msra.mxu0 0.0
  %751 = vmatprep.subr.mxu0 0.0
  %752 = vmatpush1.msra.mxu0 0.0
  %753 = vmatprep.subr.mxu0 0.0
  %754 = vmatpush1.msra.mxu0 0.0
  %755 = vmatprep.subr.mxu0 0.0
  %756 = vmatpush1.msra.mxu0 0.0
  %757 = vmatprep.subr.mxu0 0.0
  %758 = vmatpush1.msra.mxu0 0.0
  %759 = vmatprep.subr.mxu0 0.0
  %760 = vmatpush1.msra.mxu0 0.0
  %761 = vmatprep.subr.mxu0 0.0
  %762 = vmatpush1.msra.mxu0 0.0
  %763 = vmatprep.subr.mxu0 0.0
  %764 = vmatpush1.msra.mxu0 0.0
  %765 = vmatprep.subr.mxu0 0.0
  %766 = vmatpush1.msra.mxu0 0.0
  %767 = vmatprep.subr.mxu0 0.0
  %768 = vmatpush1.msra.mxu0 0.0
  %769 = vmatprep.subr.mxu0 0.0
  %770 = vmatpush1.msra.mxu0 0.0
  %771 = vmatprep.subr.mxu0 0.0
  %772 = vmatpush1.msra.mxu0 0.0
  %773 = vmatprep.subr.mxu0 0.0
  %774 = vmatpush1.msra.mxu0 0.0
  %775 = vmatprep.subr.mxu0 0.0
  %776 = vmatpush1.msra.mxu0 0.0
  %777 = vmatprep.subr.mxu0 0.0
  %778 = vmatpush1.msra.mxu0 0.0
  %779 = vmatprep.subr.mxu0 0.0
  %780 = vmatpush1.msra.mxu0 0.0
  %781 = vmatprep.subr.mxu0 0.0
  %782 = vmatpush1.msra.mxu0 0.0
  %783 = vmatprep.subr.mxu0 0.0
  %784 = vmatpush1.msra.mxu0 0.0
  %785 = vmatprep.subr.mxu0 0.0
  %786 = vmatpush1.msra.mxu0 0.0
  %787 = vmatprep.subr.mxu0 0.0
  %788 = vmatpush1.msra.mxu0 0.0
  %789 = vmatprep.subr.mxu0 0.0
  %790 = vmatpush1.msra.mxu0 0.0
  %791 = vmatprep.mubr.f32.mxu0 0.0
  %792 = vmatmul.mubr.f32.gmra.mrb[0].mxu0 %v202
  %v793 = vpop.f32.mrb[0].mxu0
  %v794 = vadd.f32 0.0, %v793
  %v795 = vpop.f32.mrb[0].mxu0
  %796 = vmatprep.mubr.f32.mxu0 0.0
  %797 = vmatmul.mubr.f32.gmra.mrb[0].mxu0 %v205
  %v798 = vpop.f32.mrb[0].mxu0
  %v799 = vadd.f32 0.0, %v798
  %v800 = vpop.f32.mrb[0].mxu0
  %801 = vdwg.mxu0
  %v803 = vsel %vm282, %v794, 0
  %v806 = vsel %vm282, %v799, 0
  %808 = vmatprep.subr.mxu0 %v72
  %809 = vmatpush1.msra.mxu0 %v71
  %810 = vmatprep.subr.mxu0 %v74
  %811 = vmatpush1.msra.mxu0 %v73
  %812 = vmatprep.subr.mxu0 %v76
  %813 = vmatpush1.msra.mxu0 %v75
  %814 = vmatprep.subr.mxu0 %v78
  %815 = vmatpush1.msra.mxu0 %v77
  %816 = vmatprep.subr.mxu0 0.0
  %817 = vmatpush1.msra.mxu0 0.0
  %818 = vmatprep.subr.mxu0 0.0
  %819 = vmatpush1.msra.mxu0 0.0
  %820 = vmatprep.subr.mxu0 0.0
  %821 = vmatpush1.msra.mxu0 0.0
  %822 = vmatprep.subr.mxu0 0.0
  %823 = vmatpush1.msra.mxu0 0.0
  %824 = vmatprep.subr.mxu0 0.0
  %825 = vmatpush1.msra.mxu0 0.0
  %826 = vmatprep.subr.mxu0 0.0
  %827 = vmatpush1.msra.mxu0 0.0
  %828 = vmatprep.subr.mxu0 0.0
  %829 = vmatpush1.msra.mxu0 0.0
  %830 = vmatprep.subr.mxu0 0.0
  %831 = vmatpush1.msra.mxu0 0.0
  %832 = vmatprep.subr.mxu0 0.0
  %833 = vmatpush1.msra.mxu0 0.0
  %834 = vmatprep.subr.mxu0 0.0
  %835 = vmatpush1.msra.mxu0 0.0
  %836 = vmatprep.subr.mxu0 0.0
  %837 = vmatpush1.msra.mxu0 0.0
  %838 = vmatprep.subr.mxu0 0.0
  %839 = vmatpush1.msra.mxu0 0.0
  %840 = vmatprep.subr.mxu0 0.0
  %841 = vmatpush1.msra.mxu0 0.0
  %842 = vmatprep.subr.mxu0 0.0
  %843 = vmatpush1.msra.mxu0 0.0
  %844 = vmatprep.subr.mxu0 0.0
  %845 = vmatpush1.msra.mxu0 0.0
  %846 = vmatprep.subr.mxu0 0.0
  %847 = vmatpush1.msra.mxu0 0.0
  %848 = vmatprep.subr.mxu0 0.0
  %849 = vmatpush1.msra.mxu0 0.0
  %850 = vmatprep.subr.mxu0 0.0
  %851 = vmatpush1.msra.mxu0 0.0
  %852 = vmatprep.subr.mxu0 0.0
  %853 = vmatpush1.msra.mxu0 0.0
  %854 = vmatprep.subr.mxu0 0.0
  %855 = vmatpush1.msra.mxu0 0.0
  %856 = vmatprep.subr.mxu0 0.0
  %857 = vmatpush1.msra.mxu0 0.0
  %858 = vmatprep.subr.mxu0 0.0
  %859 = vmatpush1.msra.mxu0 0.0
  %860 = vmatprep.subr.mxu0 0.0
  %861 = vmatpush1.msra.mxu0 0.0
  %862 = vmatprep.subr.mxu0 0.0
  %863 = vmatpush1.msra.mxu0 0.0
  %864 = vmatprep.subr.mxu0 0.0
  %865 = vmatpush1.msra.mxu0 0.0
  %866 = vmatprep.subr.mxu0 0.0
  %867 = vmatpush1.msra.mxu0 0.0
  %868 = vmatprep.subr.mxu0 0.0
  %869 = vmatpush1.msra.mxu0 0.0
  %870 = vmatprep.subr.mxu0 0.0
  %871 = vmatpush1.msra.mxu0 0.0
  %872 = vmatprep.mubr.f32.mxu0 0.0
  %873 = vmatmul.mubr.f32.gmra.mrb[0].mxu0 %v803
  %v874 = vpop.f32.mrb[0].mxu0
  %v875 = vadd.f32 0.0, %v874
  %v876 = vpop.f32.mrb[0].mxu0
  %v877 = vadd.f32 0.0, %v876
  %878 = vmatprep.mubr.f32.mxu0 0.0
  %879 = vmatmul.mubr.f32.gmra.mrb[0].mxu0 %v806
  %v880 = vpop.f32.mrb[0].mxu0
  %v881 = vadd.f32 0.0, %v880
  %v882 = vpop.f32.mrb[0].mxu0
  %v883 = vadd.f32 0.0, %v882
  %884 = vdwg.mxu0
  %v885 = vmul.f32 %v369, %v875
  %v886 = vmul.f32 %v374, %v881
  %v887 = vmul.f32 %v380, %v875
  %v888 = vmul.f32 %v384, %v881
  %891 = vrot.lane.b32.xlu0 %v887, 96
  %v892 = vpop.permute.xlu0 %891
  %893 = vrot.lane.b32.xlu0 %v888, 96
  %v894 = vpop.permute.xlu0 %893
  %v897 = vadd.f32 %v885, %v892
  %v898 = vadd.f32 %v886, %v894
  %v899 = vmul.f32 %v400, %v875
  %v900 = vmul.f32 %v404, %v881
  %903 = vrot.lane.b32.xlu0 %v899, 64
  %v904 = vpop.permute.xlu0 %903
  %905 = vrot.lane.b32.xlu0 %v900, 64
  %v906 = vpop.permute.xlu0 %905
  %v909 = vadd.f32 %v897, %v904
  %v910 = vadd.f32 %v898, %v906
  %v911 = vmul.f32 %v420, %v875
  %v912 = vmul.f32 %v424, %v881
  %915 = vrot.lane.b32.xlu0 %v911, 32
  %v916 = vpop.permute.xlu0 %915
  %917 = vrot.lane.b32.xlu0 %v912, 32
  %v918 = vpop.permute.xlu0 %917
  %v921 = vadd.f32 %v909, %v916
  %v922 = vadd.f32 %v910, %v918
  %v923 = vmul.f32 %v440, %v877
  %v924 = vmul.f32 %v444, %v883
  %v925 = vadd.f32 %v921, %v923
  %v926 = vadd.f32 %v922, %v924
  %927 = vmatprep.subr.mxu0 0.0
  %928 = vmatpush1.msra.mxu0 %v925
  %929 = vmatprep.subr.mxu0 0.0
  %930 = vmatpush1.msra.mxu0 %v926
  %931 = vmatprep.subr.mxu0 0.0
  %932 = vmatpush1.msra.mxu0 0.0
  %933 = vmatprep.subr.mxu0 0.0
  %934 = vmatpush1.msra.mxu0 0.0
  %935 = vmatprep.subr.mxu0 0.0
  %936 = vmatpush1.msra.mxu0 0.0
  %937 = vmatprep.subr.mxu0 0.0
  %938 = vmatpush1.msra.mxu0 0.0
  %939 = vmatprep.subr.mxu0 0.0
  %940 = vmatpush1.msra.mxu0 0.0
  %941 = vmatprep.subr.mxu0 0.0
  %942 = vmatpush1.msra.mxu0 0.0
  %943 = vmatprep.subr.mxu0 0.0
  %944 = vmatpush1.msra.mxu0 0.0
  %945 = vmatprep.subr.mxu0 0.0
  %946 = vmatpush1.msra.mxu0 0.0
  %947 = vmatprep.subr.mxu0 0.0
  %948 = vmatpush1.msra.mxu0 0.0
  %949 = vmatprep.subr.mxu0 0.0
  %950 = vmatpush1.msra.mxu0 0.0
  %951 = vmatprep.subr.mxu0 0.0
  %952 = vmatpush1.msra.mxu0 0.0
  %953 = vmatprep.subr.mxu0 0.0
  %954 = vmatpush1.msra.mxu0 0.0
  %955 = vmatprep.subr.mxu0 0.0
  %956 = vmatpush1.msra.mxu0 0.0
  %957 = vmatprep.subr.mxu0 0.0
  %958 = vmatpush1.msra.mxu0 0.0
  %959 = vmatprep.subr.mxu0 0.0
  %960 = vmatpush1.msra.mxu0 0.0
  %961 = vmatprep.subr.mxu0 0.0
  %962 = vmatpush1.msra.mxu0 0.0
  %963 = vmatprep.subr.mxu0 0.0
  %964 = vmatpush1.msra.mxu0 0.0
  %965 = vmatprep.subr.mxu0 0.0
  %966 = vmatpush1.msra.mxu0 0.0
  %967 = vmatprep.subr.mxu0 0.0
  %968 = vmatpush1.msra.mxu0 0.0
  %969 = vmatprep.subr.mxu0 0.0
  %970 = vmatpush1.msra.mxu0 0.0
  %971 = vmatprep.subr.mxu0 0.0
  %972 = vmatpush1.msra.mxu0 0.0
  %973 = vmatprep.subr.mxu0 0.0
  %974 = vmatpush1.msra.mxu0 0.0
  %975 = vmatprep.subr.mxu0 0.0
  %976 = vmatpush1.msra.mxu0 0.0
  %977 = vmatprep.subr.mxu0 0.0
  %978 = vmatpush1.msra.mxu0 0.0
  %979 = vmatprep.subr.mxu0 0.0
  %980 = vmatpush1.msra.mxu0 0.0
  %981 = vmatprep.subr.mxu0 0.0
  %982 = vmatpush1.msra.mxu0 0.0
  %983 = vmatprep.subr.mxu0 0.0
  %984 = vmatpush1.msra.mxu0 0.0
  %985 = vmatprep.subr.mxu0 0.0
  %986 = vmatpush1.msra.mxu0 0.0
  %987 = vmatprep.subr.mxu0 0.0
  %988 = vmatpush1.msra.mxu0 0.0
  %989 = vmatprep.subr.mxu0 0.0
  %990 = vmatpush1.msra.mxu0 0.0
  %991 = vmatprep.mubr.f32.mxu0 0.0
  %992 = vmatmul.mubr.f32.gmra.mrb[0].mxu0 %v451
  %v993 = vpop.f32.mrb[0].mxu0
  %v994 = vadd.f32 0.0, %v993
  %v995 = vpop.f32.mrb[0].mxu0
  %996 = vdwg.mxu0
  %v997 = vmul.f32 %v994, %v526
  %v998 = vadd.f32 %v997, %v533
  %v999 = vmax.f32 %v998, 0.0
  %v1001 = vsel %vm282, %v999, 0
  %1003 = vmatprep.subr.mxu0 0.0
  %1004 = vmatpush1.msra.mxu0 %v80
  %1005 = vmatprep.subr.mxu0 0.0
  %1006 = vmatpush1.msra.mxu0 %v81
  %1007 = vmatprep.subr.mxu0 0.0
  %1008 = vmatpush1.msra.mxu0 %v82
  %1009 = vmatprep.subr.mxu0 0.0
  %1010 = vmatpush1.msra.mxu0 %v83
  %1011 = vmatprep.subr.mxu0 0.0
  %1012 = vmatpush1.msra.mxu0 0.0
  %1013 = vmatprep.subr.mxu0 0.0
  %1014 = vmatpush1.msra.mxu0 0.0
  %1015 = vmatprep.subr.mxu0 0.0
  %1016 = vmatpush1.msra.mxu0 0.0
  %1017 = vmatprep.subr.mxu0 0.0
  %1018 = vmatpush1.msra.mxu0 0.0
  %1019 = vmatprep.subr.mxu0 0.0
  %1020 = vmatpush1.msra.mxu0 0.0
  %1021 = vmatprep.subr.mxu0 0.0
  %1022 = vmatpush1.msra.mxu0 0.0
  %1023 = vmatprep.subr.mxu0 0.0
  %1024 = vmatpush1.msra.mxu0 0.0
  %1025 = vmatprep.subr.mxu0 0.0
  %1026 = vmatpush1.msra.mxu0 0.0
  %1027 = vmatprep.subr.mxu0 0.0
  %1028 = vmatpush1.msra.mxu0 0.0
  %1029 = vmatprep.subr.mxu0 0.0
  %1030 = vmatpush1.msra.mxu0 0.0
  %1031 = vmatprep.subr.mxu0 0.0
  %1032 = vmatpush1.msra.mxu0 0.0
  %1033 = vmatprep.subr.mxu0 0.0
  %1034 = vmatpush1.msra.mxu0 0.0
  %1035 = vmatprep.subr.mxu0 0.0
  %1036 = vmatpush1.msra.mxu0 0.0
  %1037 = vmatprep.subr.mxu0 0.0
  %1038 = vmatpush1.msra.mxu0 0.0
  %1039 = vmatprep.subr.mxu0 0.0
  %1040 = vmatpush1.msra.mxu0 0.0
  %1041 = vmatprep.subr.mxu0 0.0
  %1042 = vmatpush1.msra.mxu0 0.0
  %1043 = vmatprep.subr.mxu0 0.0
  %1044 = vmatpush1.msra.mxu0 0.0
  %1045 = vmatprep.subr.mxu0 0.0
  %1046 = vmatpush1.msra.mxu0 0.0
  %1047 = vmatprep.subr.mxu0 0.0
  %1048 = vmatpush1.msra.mxu0 0.0
  %1049 = vmatprep.subr.mxu0 0.0
  %1050 = vmatpush1.msra.mxu0 0.0
  %1051 = vmatprep.subr.mxu0 0.0
  %1052 = vmatpush1.msra.mxu0 0.0
  %1053 = vmatprep.subr.mxu0 0.0
  %1054 = vmatpush1.msra.mxu0 0.0
  %1055 = vmatprep.subr.mxu0 0.0
  %1056 = vmatpush1.msra.mxu0 0.0
  %1057 = vmatprep.subr.mxu0 0.0
  %1058 = vmatpush1.msra.mxu0 0.0
  %1059 = vmatprep.subr.mxu0 0.0
  %1060 = vmatpush1.msra.mxu0 0.0
  %1061 = vmatprep.subr.mxu0 0.0
  %1062 = vmatpush1.msra.mxu0 0.0
  %1063 = vmatprep.subr.mxu0 0.0
  %1064 = vmatpush1.msra.mxu0 0.0
  %1065 = vmatprep.subr.mxu0 0.0
  %1066 = vmatpush1.msra.mxu0 0.0
  %1067 = vmatprep.mubr.f32.mxu0 0.0
  %1068 = vmatmul.mubr.f32.gmra.mrb[0].mxu0 %v1001
  %v1069 = vpop.f32.mrb[0].mxu0
  %v1070 = vadd.f32 %v541, %v1069
  %v1071 = vpop.f32.mrb[0].mxu0
  %1072 = vdwg.mxu0
  %v1073 = vsel %vm282, %v725, 0
  %1075 = vmatprep.subr.mxu0 0.0
  %1076 = vmatpush1.msra.mxu0 %v85
  %1077 = vmatprep.subr.mxu0 0.0
  %1078 = vmatpush1.msra.mxu0 %v86
  %1079 = vmatprep.subr.mxu0 0.0
  %1080 = vmatpush1.msra.mxu0 %v87
  %1081 = vmatprep.subr.mxu0 0.0
  %1082 = vmatpush1.msra.mxu0 %v88
  %1083 = vmatprep.subr.mxu0 0.0
  %1084 = vmatpush1.msra.mxu0 0.0
  %1085 = vmatprep.subr.mxu0 0.0
  %1086 = vmatpush1.msra.mxu0 0.0
  %1087 = vmatprep.subr.mxu0 0.0
  %1088 = vmatpush1.msra.mxu0 0.0
  %1089 = vmatprep.subr.mxu0 0.0
  %1090 = vmatpush1.msra.mxu0 0.0
  %1091 = vmatprep.subr.mxu0 0.0
  %1092 = vmatpush1.msra.mxu0 0.0
  %1093 = vmatprep.subr.mxu0 0.0
  %1094 = vmatpush1.msra.mxu0 0.0
  %1095 = vmatprep.subr.mxu0 0.0
  %1096 = vmatpush1.msra.mxu0 0.0
  %1097 = vmatprep.subr.mxu0 0.0
  %1098 = vmatpush1.msra.mxu0 0.0
  %1099 = vmatprep.subr.mxu0 0.0
  %1100 = vmatpush1.msra.mxu0 0.0
  %1101 = vmatprep.subr.mxu0 0.0
  %1102 = vmatpush1.msra.mxu0 0.0
  %1103 = vmatprep.subr.mxu0 0.0
  %1104 = vmatpush1.msra.mxu0 0.0
  %1105 = vmatprep.subr.mxu0 0.0
  %1106 = vmatpush1.msra.mxu0 0.0
  %1107 = vmatprep.subr.mxu0 0.0
  %1108 = vmatpush1.msra.mxu0 0.0
  %1109 = vmatprep.subr.mxu0 0.0
  %1110 = vmatpush1.msra.mxu0 0.0
  %1111 = vmatprep.subr.mxu0 0.0
  %1112 = vmatpush1.msra.mxu0 0.0
  %1113 = vmatprep.subr.mxu0 0.0
  %1114 = vmatpush1.msra.mxu0 0.0
  %1115 = vmatprep.subr.mxu0 0.0
  %1116 = vmatpush1.msra.mxu0 0.0
  %1117 = vmatprep.subr.mxu0 0.0
  %1118 = vmatpush1.msra.mxu0 0.0
  %1119 = vmatprep.subr.mxu0 0.0
  %1120 = vmatpush1.msra.mxu0 0.0
  %1121 = vmatprep.subr.mxu0 0.0
  %1122 = vmatpush1.msra.mxu0 0.0
  %1123 = vmatprep.subr.mxu0 0.0
  %1124 = vmatpush1.msra.mxu0 0.0
  %1125 = vmatprep.subr.mxu0 0.0
  %1126 = vmatpush1.msra.mxu0 0.0
  %1127 = vmatprep.subr.mxu0 0.0
  %1128 = vmatpush1.msra.mxu0 0.0
  %1129 = vmatprep.subr.mxu0 0.0
  %1130 = vmatpush1.msra.mxu0 0.0
  %1131 = vmatprep.subr.mxu0 0.0
  %1132 = vmatpush1.msra.mxu0 0.0
  %1133 = vmatprep.subr.mxu0 0.0
  %1134 = vmatpush1.msra.mxu0 0.0
  %1135 = vmatprep.subr.mxu0 0.0
  %1136 = vmatpush1.msra.mxu0 0.0
  %1137 = vmatprep.subr.mxu0 0.0
  %1138 = vmatpush1.msra.mxu0 0.0
  %1139 = vmatprep.mubr.f32.mxu0 0.0
  %1140 = vmatmul.mubr.f32.gmra.mrb[0].mxu0 %v1073
  %v1141 = vpop.f32.mrb[0].mxu0
  %v1142 = vadd.f32 %v620, %v1141
  %v1143 = vpop.f32.mrb[0].mxu0
  %1144 = vdwg.mxu0
  %v1145 = vadd.f32 %v1070, %v1142
  %v1146 = vsub.f32 0.0, %v1145
  %v1147 = vmul.f32 %v1146, 1.442695
  %v1148 = vpow.pop %v1147
  %v1149 = vadd.f32 %v1148, 1.0
  %v1150 = vrcp.pop %v1149
  %1152 = vrot.lane.b32.xlu0 %v1142, 64
  %v1153 = vpop.permute.xlu0 %1152
  %v1155 = vmul.f32 %v1150, %v1153
  %1157 = vrot.lane.b32.xlu0 %v1155, 64
  %v1158 = vpop.permute.xlu0 %1157
  %v1160 = vadd.f32 %v1070, %v1158
  %v1161 = vtanh.pop %v1160
  %v1162 = vsub.f32 1.0, %v1150
  %1164 = vrot.lane.b32.xlu0 %v1161, 96
  %v1165 = vpop.permute.xlu0 %1164
  %v1167 = vmul.f32 %v1162, %v1165
  %v1168 = vmul.f32 %v1150, %v722
  %v1169 = vadd.f32 %v1167, %v1168
  %1171 = vrot.lane.b32.xlu0 %v1169, 96
  %v1172 = vpop.permute.xlu0 %1171
  %1174 = vmatprep.subr.mxu0 0.0
  %1175 = vmatpush1.msra.mxu0 %v1172
  %1176 = vmatprep.subr.mxu0 0.0
  %1177 = vmatpush1.msra.mxu0 0.0
  %1178 = vmatprep.subr.mxu0 0.0
  %1179 = vmatpush1.msra.mxu0 0.0
  %1180 = vmatprep.subr.mxu0 0.0
  %1181 = vmatpush1.msra.mxu0 0.0
  %1182 = vmatprep.subr.mxu0 0.0
  %1183 = vmatpush1.msra.mxu0 0.0
  %1184 = vmatprep.subr.mxu0 0.0
  %1185 = vmatpush1.msra.mxu0 0.0
  %1186 = vmatprep.subr.mxu0 0.0
  %1187 = vmatpush1.msra.mxu0 0.0
  %1188 = vmatprep.subr.mxu0 0.0
  %1189 = vmatpush1.msra.mxu0 0.0
  %1190 = vmatprep.subr.mxu0 0.0
  %1191 = vmatpush1.msra.mxu0 0.0
  %1192 = vmatprep.subr.mxu0 0.0
  %1193 = vmatpush1.msra.mxu0 0.0
  %1194 = vmatprep.subr.mxu0 0.0
  %1195 = vmatpush1.msra.mxu0 0.0
  %1196 = vmatprep.subr.mxu0 0.0
  %1197 = vmatpush1.msra.mxu0 0.0
  %1198 = vmatprep.subr.mxu0 0.0
  %1199 = vmatpush1.msra.mxu0 0.0
  %1200 = vmatprep.subr.mxu0 0.0
  %1201 = vmatpush1.msra.mxu0 0.0
  %1202 = vmatprep.subr.mxu0 0.0
  %1203 = vmatpush1.msra.mxu0 0.0
  %1204 = vmatprep.subr.mxu0 0.0
  %1205 = vmatpush1.msra.mxu0 0.0
  %1206 = vmatprep.subr.mxu0 0.0
  %1207 = vmatpush1.msra.mxu0 0.0
  %1208 = vmatprep.subr.mxu0 0.0
  %1209 = vmatpush1.msra.mxu0 0.0
  %1210 = vmatprep.subr.mxu0 0.0
  %1211 = vmatpush1.msra.mxu0 0.0
  %1212 = vmatprep.subr.mxu0 0.0
  %1213 = vmatpush1.msra.mxu0 0.0
  %1214 = vmatprep.subr.mxu0 0.0
  %1215 = vmatpush1.msra.mxu0 0.0
  %1216 = vmatprep.subr.mxu0 0.0
  %1217 = vmatpush1.msra.mxu0 0.0
  %1218 = vmatprep.subr.mxu0 0.0
  %1219 = vmatpush1.msra.mxu0 0.0
  %1220 = vmatprep.subr.mxu0 0.0
  %1221 = vmatpush1.msra.mxu0 0.0
  %1222 = vmatprep.subr.mxu0 0.0
  %1223 = vmatpush1.msra.mxu0 0.0
  %1224 = vmatprep.subr.mxu0 0.0
  %1225 = vmatpush1.msra.mxu0 0.0
  %1226 = vmatprep.subr.mxu0 0.0
  %1227 = vmatpush1.msra.mxu0 0.0
  %1228 = vmatprep.subr.mxu0 0.0
  %1229 = vmatpush1.msra.mxu0 0.0
  %1230 = vmatprep.subr.mxu0 0.0
  %1231 = vmatpush1.msra.mxu0 0.0
  %1232 = vmatprep.subr.mxu0 0.0
  %1233 = vmatpush1.msra.mxu0 0.0
  %1234 = vmatprep.subr.mxu0 0.0
  %1235 = vmatpush1.msra.mxu0 0.0
  %1236 = vmatprep.subr.mxu0 0.0
  %1237 = vmatpush1.msra.mxu0 0.0
  %1238 = vmatprep.mubr.f32.mxu0 0.0
  %1239 = vmatmul.mubr.f32.gmra.mrb[0].mxu0 %v202
  %v1240 = vpop.f32.mrb[0].mxu0
  %v1241 = vadd.f32 0.0, %v1240
  %v1242 = vpop.f32.mrb[0].mxu0
  %1243 = vmatprep.mubr.f32.mxu0 0.0
  %1244 = vmatmul.mubr.f32.gmra.mrb[0].mxu0 %v205
  %v1245 = vpop.f32.mrb[0].mxu0
  %v1246 = vadd.f32 0.0, %v1245
  %v1247 = vpop.f32.mrb[0].mxu0
  %1248 = vdwg.mxu0
  %v1250 = vsel %vm282, %v1241, 0
  %v1253 = vsel %vm282, %v1246, 0
  %1255 = vmatprep.subr.mxu0 %v72
  %1256 = vmatpush1.msra.mxu0 %v71
  %1257 = vmatprep.subr.mxu0 %v74
  %1258 = vmatpush1.msra.mxu0 %v73
  %1259 = vmatprep.subr.mxu0 %v76
  %1260 = vmatpush1.msra.mxu0 %v75
  %1261 = vmatprep.subr.mxu0 %v78
  %1262 = vmatpush1.msra.mxu0 %v77
  %1263 = vmatprep.subr.mxu0 0.0
  %1264 = vmatpush1.msra.mxu0 0.0
  %1265 = vmatprep.subr.mxu0 0.0
  %1266 = vmatpush1.msra.mxu0 0.0
  %1267 = vmatprep.subr.mxu0 0.0
  %1268 = vmatpush1.msra.mxu0 0.0
  %1269 = vmatprep.subr.mxu0 0.0
  %1270 = vmatpush1.msra.mxu0 0.0
  %1271 = vmatprep.subr.mxu0 0.0
  %1272 = vmatpush1.msra.mxu0 0.0
  %1273 = vmatprep.subr.mxu0 0.0
  %1274 = vmatpush1.msra.mxu0 0.0
  %1275 = vmatprep.subr.mxu0 0.0
  %1276 = vmatpush1.msra.mxu0 0.0
  %1277 = vmatprep.subr.mxu0 0.0
  %1278 = vmatpush1.msra.mxu0 0.0
  %1279 = vmatprep.subr.mxu0 0.0
  %1280 = vmatpush1.msra.mxu0 0.0
  %1281 = vmatprep.subr.mxu0 0.0
  %1282 = vmatpush1.msra.mxu0 0.0
  %1283 = vmatprep.subr.mxu0 0.0
  %1284 = vmatpush1.msra.mxu0 0.0
  %1285 = vmatprep.subr.mxu0 0.0
  %1286 = vmatpush1.msra.mxu0 0.0
  %1287 = vmatprep.subr.mxu0 0.0
  %1288 = vmatpush1.msra.mxu0 0.0
  %1289 = vmatprep.subr.mxu0 0.0
  %1290 = vmatpush1.msra.mxu0 0.0
  %1291 = vmatprep.subr.mxu0 0.0
  %1292 = vmatpush1.msra.mxu0 0.0
  %1293 = vmatprep.subr.mxu0 0.0
  %1294 = vmatpush1.msra.mxu0 0.0
  %1295 = vmatprep.subr.mxu0 0.0
  %1296 = vmatpush1.msra.mxu0 0.0
  %1297 = vmatprep.subr.mxu0 0.0
  %1298 = vmatpush1.msra.mxu0 0.0
  %1299 = vmatprep.subr.mxu0 0.0
  %1300 = vmatpush1.msra.mxu0 0.0
  %1301 = vmatprep.subr.mxu0 0.0
  %1302 = vmatpush1.msra.mxu0 0.0
  %1303 = vmatprep.subr.mxu0 0.0
  %1304 = vmatpush1.msra.mxu0 0.0
  %1305 = vmatprep.subr.mxu0 0.0
  %1306 = vmatpush1.msra.mxu0 0.0
  %1307 = vmatprep.subr.mxu0 0.0
  %1308 = vmatpush1.msra.mxu0 0.0
  %1309 = vmatprep.subr.mxu0 0.0
  %1310 = vmatpush1.msra.mxu0 0.0
  %1311 = vmatprep.subr.mxu0 0.0
  %1312 = vmatpush1.msra.mxu0 0.0
  %1313 = vmatprep.subr.mxu0 0.0
  %1314 = vmatpush1.msra.mxu0 0.0
  %1315 = vmatprep.subr.mxu0 0.0
  %1316 = vmatpush1.msra.mxu0 0.0
  %1317 = vmatprep.subr.mxu0 0.0
  %1318 = vmatpush1.msra.mxu0 0.0
  %1319 = vmatprep.mubr.f32.mxu0 0.0
  %1320 = vmatmul.mubr.f32.gmra.mrb[0].mxu0 %v1250
  %v1321 = vpop.f32.mrb[0].mxu0
  %v1322 = vadd.f32 0.0, %v1321
  %v1323 = vpop.f32.mrb[0].mxu0
  %v1324 = vadd.f32 0.0, %v1323
  %1325 = vmatprep.mubr.f32.mxu0 0.0
  %1326 = vmatmul.mubr.f32.gmra.mrb[0].mxu0 %v1253
  %v1327 = vpop.f32.mrb[0].mxu0
  %v1328 = vadd.f32 0.0, %v1327
  %v1329 = vpop.f32.mrb[0].mxu0
  %v1330 = vadd.f32 0.0, %v1329
  %1331 = vdwg.mxu0
  %v1332 = vmul.f32 %v369, %v1322
  %v1333 = vmul.f32 %v374, %v1328
  %v1334 = vmul.f32 %v380, %v1322
  %v1335 = vmul.f32 %v384, %v1328
  %1338 = vrot.lane.b32.xlu0 %v1334, 96
  %v1339 = vpop.permute.xlu0 %1338
  %1340 = vrot.lane.b32.xlu0 %v1335, 96
  %v1341 = vpop.permute.xlu0 %1340
  %v1344 = vadd.f32 %v1332, %v1339
  %v1345 = vadd.f32 %v1333, %v1341
  %v1346 = vmul.f32 %v400, %v1322
  %v1347 = vmul.f32 %v404, %v1328
  %1350 = vrot.lane.b32.xlu0 %v1346, 64
  %v1351 = vpop.permute.xlu0 %1350
  %1352 = vrot.lane.b32.xlu0 %v1347, 64
  %v1353 = vpop.permute.xlu0 %1352
  %v1356 = vadd.f32 %v1344, %v1351
  %v1357 = vadd.f32 %v1345, %v1353
  %v1358 = vmul.f32 %v420, %v1322
  %v1359 = vmul.f32 %v424, %v1328
  %1362 = vrot.lane.b32.xlu0 %v1358, 32
  %v1363 = vpop.permute.xlu0 %1362
  %1364 = vrot.lane.b32.xlu0 %v1359, 32
  %v1365 = vpop.permute.xlu0 %1364
  %v1368 = vadd.f32 %v1356, %v1363
  %v1369 = vadd.f32 %v1357, %v1365
  %v1370 = vmul.f32 %v440, %v1324
  %v1371 = vmul.f32 %v444, %v1330
  %v1372 = vadd.f32 %v1368, %v1370
  %v1373 = vadd.f32 %v1369, %v1371
  %1374 = vmatprep.subr.mxu0 0.0
  %1375 = vmatpush1.msra.mxu0 %v1372
  %1376 = vmatprep.subr.mxu0 0.0
  %1377 = vmatpush1.msra.mxu0 %v1373
  %1378 = vmatprep.subr.mxu0 0.0
  %1379 = vmatpush1.msra.mxu0 0.0
  %1380 = vmatprep.subr.mxu0 0.0
  %1381 = vmatpush1.msra.mxu0 0.0
  %1382 = vmatprep.subr.mxu0 0.0
  %1383 = vmatpush1.msra.mxu0 0.0
  %1384 = vmatprep.subr.mxu0 0.0
  %1385 = vmatpush1.msra.mxu0 0.0
  %1386 = vmatprep.subr.mxu0 0.0
  %1387 = vmatpush1.msra.mxu0 0.0
  %1388 = vmatprep.subr.mxu0 0.0
  %1389 = vmatpush1.msra.mxu0 0.0
  %1390 = vmatprep.subr.mxu0 0.0
  %1391 = vmatpush1.msra.mxu0 0.0
  %1392 = vmatprep.subr.mxu0 0.0
  %1393 = vmatpush1.msra.mxu0 0.0
  %1394 = vmatprep.subr.mxu0 0.0
  %1395 = vmatpush1.msra.mxu0 0.0
  %1396 = vmatprep.subr.mxu0 0.0
  %1397 = vmatpush1.msra.mxu0 0.0
  %1398 = vmatprep.subr.mxu0 0.0
  %1399 = vmatpush1.msra.mxu0 0.0
  %1400 = vmatprep.subr.mxu0 0.0
  %1401 = vmatpush1.msra.mxu0 0.0
  %1402 = vmatprep.subr.mxu0 0.0
  %1403 = vmatpush1.msra.mxu0 0.0
  %1404 = vmatprep.subr.mxu0 0.0
  %1405 = vmatpush1.msra.mxu0 0.0
  %1406 = vmatprep.subr.mxu0 0.0
  %1407 = vmatpush1.msra.mxu0 0.0
  %1408 = vmatprep.subr.mxu0 0.0
  %1409 = vmatpush1.msra.mxu0 0.0
  %1410 = vmatprep.subr.mxu0 0.0
  %1411 = vmatpush1.msra.mxu0 0.0
  %1412 = vmatprep.subr.mxu0 0.0
  %1413 = vmatpush1.msra.mxu0 0.0
  %1414 = vmatprep.subr.mxu0 0.0
  %1415 = vmatpush1.msra.mxu0 0.0
  %1416 = vmatprep.subr.mxu0 0.0
  %1417 = vmatpush1.msra.mxu0 0.0
  %1418 = vmatprep.subr.mxu0 0.0
  %1419 = vmatpush1.msra.mxu0 0.0
  %1420 = vmatprep.subr.mxu0 0.0
  %1421 = vmatpush1.msra.mxu0 0.0
  %1422 = vmatprep.subr.mxu0 0.0
  %1423 = vmatpush1.msra.mxu0 0.0
  %1424 = vmatprep.subr.mxu0 0.0
  %1425 = vmatpush1.msra.mxu0 0.0
  %1426 = vmatprep.subr.mxu0 0.0
  %1427 = vmatpush1.msra.mxu0 0.0
  %1428 = vmatprep.subr.mxu0 0.0
  %1429 = vmatpush1.msra.mxu0 0.0
  %1430 = vmatprep.subr.mxu0 0.0
  %1431 = vmatpush1.msra.mxu0 0.0
  %1432 = vmatprep.subr.mxu0 0.0
  %1433 = vmatpush1.msra.mxu0 0.0
  %1434 = vmatprep.subr.mxu0 0.0
  %1435 = vmatpush1.msra.mxu0 0.0
  %1436 = vmatprep.subr.mxu0 0.0
  %1437 = vmatpush1.msra.mxu0 0.0
  %1438 = vmatprep.mubr.f32.mxu0 0.0
  %1439 = vmatmul.mubr.f32.gmra.mrb[0].mxu0 %v451
  %v1440 = vpop.f32.mrb[0].mxu0
  %v1441 = vadd.f32 0.0, %v1440
  %v1442 = vpop.f32.mrb[0].mxu0
  %1443 = vdwg.mxu0
  %v1444 = vmul.f32 %v1441, %v526
  %v1445 = vadd.f32 %v1444, %v533
  %v1446 = vmax.f32 %v1445, 0.0
  %v1448 = vsel %vm282, %v1446, 0
  %1450 = vmatprep.subr.mxu0 0.0
  %1451 = vmatpush1.msra.mxu0 %v80
  %1452 = vmatprep.subr.mxu0 0.0
  %1453 = vmatpush1.msra.mxu0 %v81
  %1454 = vmatprep.subr.mxu0 0.0
  %1455 = vmatpush1.msra.mxu0 %v82
  %1456 = vmatprep.subr.mxu0 0.0
  %1457 = vmatpush1.msra.mxu0 %v83
  %1458 = vmatprep.subr.mxu0 0.0
  %1459 = vmatpush1.msra.mxu0 0.0
  %1460 = vmatprep.subr.mxu0 0.0
  %1461 = vmatpush1.msra.mxu0 0.0
  %1462 = vmatprep.subr.mxu0 0.0
  %1463 = vmatpush1.msra.mxu0 0.0
  %1464 = vmatprep.subr.mxu0 0.0
  %1465 = vmatpush1.msra.mxu0 0.0
  %1466 = vmatprep.subr.mxu0 0.0
  %1467 = vmatpush1.msra.mxu0 0.0
  %1468 = vmatprep.subr.mxu0 0.0
  %1469 = vmatpush1.msra.mxu0 0.0
  %1470 = vmatprep.subr.mxu0 0.0
  %1471 = vmatpush1.msra.mxu0 0.0
  %1472 = vmatprep.subr.mxu0 0.0
  %1473 = vmatpush1.msra.mxu0 0.0
  %1474 = vmatprep.subr.mxu0 0.0
  %1475 = vmatpush1.msra.mxu0 0.0
  %1476 = vmatprep.subr.mxu0 0.0
  %1477 = vmatpush1.msra.mxu0 0.0
  %1478 = vmatprep.subr.mxu0 0.0
  %1479 = vmatpush1.msra.mxu0 0.0
  %1480 = vmatprep.subr.mxu0 0.0
  %1481 = vmatpush1.msra.mxu0 0.0
  %1482 = vmatprep.subr.mxu0 0.0
  %1483 = vmatpush1.msra.mxu0 0.0
  %1484 = vmatprep.subr.mxu0 0.0
  %1485 = vmatpush1.msra.mxu0 0.0
  %1486 = vmatprep.subr.mxu0 0.0
  %1487 = vmatpush1.msra.mxu0 0.0
  %1488 = vmatprep.subr.mxu0 0.0
  %1489 = vmatpush1.msra.mxu0 0.0
  %1490 = vmatprep.subr.mxu0 0.0
  %1491 = vmatpush1.msra.mxu0 0.0
  %1492 = vmatprep.subr.mxu0 0.0
  %1493 = vmatpush1.msra.mxu0 0.0
  %1494 = vmatprep.subr.mxu0 0.0
  %1495 = vmatpush1.msra.mxu0 0.0
  %1496 = vmatprep.subr.mxu0 0.0
  %1497 = vmatpush1.msra.mxu0 0.0
  %1498 = vmatprep.subr.mxu0 0.0
  %1499 = vmatpush1.msra.mxu0 0.0
  %1500 = vmatprep.subr.mxu0 0.0
  %1501 = vmatpush1.msra.mxu0 0.0
  %1502 = vmatprep.subr.mxu0 0.0
  %1503 = vmatpush1.msra.mxu0 0.0
  %1504 = vmatprep.subr.mxu0 0.0
  %1505 = vmatpush1.msra.mxu0 0.0
  %1506 = vmatprep.subr.mxu0 0.0
  %1507 = vmatpush1.msra.mxu0 0.0
  %1508 = vmatprep.subr.mxu0 0.0
  %1509 = vmatpush1.msra.mxu0 0.0
  %1510 = vmatprep.subr.mxu0 0.0
  %1511 = vmatpush1.msra.mxu0 0.0
  %1512 = vmatprep.subr.mxu0 0.0
  %1513 = vmatpush1.msra.mxu0 0.0
  %1514 = vmatprep.mubr.f32.mxu0 0.0
  %1515 = vmatmul.mubr.f32.gmra.mrb[0].mxu0 %v1448
  %v1516 = vpop.f32.mrb[0].mxu0
  %v1517 = vadd.f32 %v541, %v1516
  %v1518 = vpop.f32.mrb[0].mxu0
  %1519 = vdwg.mxu0
  %v1520 = vsel %vm282, %v1172, 0
  %1522 = vmatprep.subr.mxu0 0.0
  %1523 = vmatpush1.msra.mxu0 %v85
  %1524 = vmatprep.subr.mxu0 0.0
  %1525 = vmatpush1.msra.mxu0 %v86
  %1526 = vmatprep.subr.mxu0 0.0
  %1527 = vmatpush1.msra.mxu0 %v87
  %1528 = vmatprep.subr.mxu0 0.0
  %1529 = vmatpush1.msra.mxu0 %v88
  %1530 = vmatprep.subr.mxu0 0.0
  %1531 = vmatpush1.msra.mxu0 0.0
  %1532 = vmatprep.subr.mxu0 0.0
  %1533 = vmatpush1.msra.mxu0 0.0
  %1534 = vmatprep.subr.mxu0 0.0
  %1535 = vmatpush1.msra.mxu0 0.0
  %1536 = vmatprep.subr.mxu0 0.0
  %1537 = vmatpush1.msra.mxu0 0.0
  %1538 = vmatprep.subr.mxu0 0.0
  %1539 = vmatpush1.msra.mxu0 0.0
  %1540 = vmatprep.subr.mxu0 0.0
  %1541 = vmatpush1.msra.mxu0 0.0
  %1542 = vmatprep.subr.mxu0 0.0
  %1543 = vmatpush1.msra.mxu0 0.0
  %1544 = vmatprep.subr.mxu0 0.0
  %1545 = vmatpush1.msra.mxu0 0.0
  %1546 = vmatprep.subr.mxu0 0.0
  %1547 = vmatpush1.msra.mxu0 0.0
  %1548 = vmatprep.subr.mxu0 0.0
  %1549 = vmatpush1.msra.mxu0 0.0
  %1550 = vmatprep.subr.mxu0 0.0
  %1551 = vmatpush1.msra.mxu0 0.0
  %1552 = vmatprep.subr.mxu0 0.0
  %1553 = vmatpush1.msra.mxu0 0.0
  %1554 = vmatprep.subr.mxu0 0.0
  %1555 = vmatpush1.msra.mxu0 0.0
  %1556 = vmatprep.subr.mxu0 0.0
  %1557 = vmatpush1.msra.mxu0 0.0
  %1558 = vmatprep.subr.mxu0 0.0
  %1559 = vmatpush1.msra.mxu0 0.0
  %1560 = vmatprep.subr.mxu0 0.0
  %1561 = vmatpush1.msra.mxu0 0.0
  %1562 = vmatprep.subr.mxu0 0.0
  %1563 = vmatpush1.msra.mxu0 0.0
  %1564 = vmatprep.subr.mxu0 0.0
  %1565 = vmatpush1.msra.mxu0 0.0
  %1566 = vmatprep.subr.mxu0 0.0
  %1567 = vmatpush1.msra.mxu0 0.0
  %1568 = vmatprep.subr.mxu0 0.0
  %1569 = vmatpush1.msra.mxu0 0.0
  %1570 = vmatprep.subr.mxu0 0.0
  %1571 = vmatpush1.msra.mxu0 0.0
  %1572 = vmatprep.subr.mxu0 0.0
  %1573 = vmatpush1.msra.mxu0 0.0
  %1574 = vmatprep.subr.mxu0 0.0
  %1575 = vmatpush1.msra.mxu0 0.0
  %1576 = vmatprep.subr.mxu0 0.0
  %1577 = vmatpush1.msra.mxu0 0.0
  %1578 = vmatprep.subr.mxu0 0.0
  %1579 = vmatpush1.msra.mxu0 0.0
  %1580 = vmatprep.subr.mxu0 0.0
  %1581 = vmatpush1.msra.mxu0 0.0
  %1582 = vmatprep.subr.mxu0 0.0
  %1583 = vmatpush1.msra.mxu0 0.0
  %1584 = vmatprep.subr.mxu0 0.0
  %1585 = vmatpush1.msra.mxu0 0.0
  %1586 = vmatprep.mubr.f32.mxu0 0.0
  %1587 = vmatmul.mubr.f32.gmra.mrb[0].mxu0 %v1520
  %v1588 = vpop.f32.mrb[0].mxu0
  %v1589 = vadd.f32 %v620, %v1588
  %v1590 = vpop.f32.mrb[0].mxu0
  %1591 = vdwg.mxu0
  %v1592 = vadd.f32 %v1517, %v1589
  %v1593 = vsub.f32 0.0, %v1592
  %v1594 = vmul.f32 %v1593, 1.442695
  %v1595 = vpow.pop %v1594
  %v1596 = vadd.f32 %v1595, 1.0
  %v1597 = vrcp.pop %v1596
  %1599 = vrot.lane.b32.xlu0 %v1589, 64
  %v1600 = vpop.permute.xlu0 %1599
  %v1602 = vmul.f32 %v1597, %v1600
  %1604 = vrot.lane.b32.xlu0 %v1602, 64
  %v1605 = vpop.permute.xlu0 %1604
  %v1607 = vadd.f32 %v1517, %v1605
  %v1608 = vtanh.pop %v1607
  %v1609 = vsub.f32 1.0, %v1597
  %1611 = vrot.lane.b32.xlu0 %v1608, 96
  %v1612 = vpop.permute.xlu0 %1611
  %v1614 = vmul.f32 %v1609, %v1612
  %v1615 = vmul.f32 %v1597, %v1169
  %v1616 = vadd.f32 %v1614, %v1615
  %1618 = vrot.lane.b32.xlu0 %v1616, 96
  %v1619 = vpop.permute.xlu0 %1618
  %v1621 = vsel %vm282, %v1619, %v719
  %v1623 = vlaneseq
  %v1624 = vshrl.u32 %v1623, 7
  %v1625 = vsub.s32 0, %v1624
  %v1626 = vrot.slane %v98, %v1625
  %vm1628 = vcmask 523264
  %v1630 = vsel %vm1628, %v1621, 0
  %1632 = vmatprep.subr.mxu0 0.0
  %1633 = vmatpush1.msra.mxu0 %v90
  %1634 = vmatprep.subr.mxu0 0.0
  %1635 = vmatpush1.msra.mxu0 %v91
  %1636 = vmatprep.subr.mxu0 0.0
  %1637 = vmatpush1.msra.mxu0 %v92
  %1638 = vmatprep.subr.mxu0 0.0
  %1639 = vmatpush1.msra.mxu0 %v93
  %1640 = vmatprep.subr.mxu0 0.0
  %1641 = vmatpush1.msra.mxu0 %v94
  %1642 = vmatprep.subr.mxu0 0.0
  %1643 = vmatpush1.msra.mxu0 %v95
  %1644 = vmatprep.subr.mxu0 0.0
  %1645 = vmatpush1.msra.mxu0 %v96
  %1646 = vmatprep.subr.mxu0 0.0
  %1647 = vmatpush1.msra.mxu0 %v97
  %1648 = vmatprep.subr.mxu0 0.0
  %1649 = vmatpush1.msra.mxu0 0.0
  %1650 = vmatprep.subr.mxu0 0.0
  %1651 = vmatpush1.msra.mxu0 0.0
  %1652 = vmatprep.subr.mxu0 0.0
  %1653 = vmatpush1.msra.mxu0 0.0
  %1654 = vmatprep.subr.mxu0 0.0
  %1655 = vmatpush1.msra.mxu0 0.0
  %1656 = vmatprep.subr.mxu0 0.0
  %1657 = vmatpush1.msra.mxu0 0.0
  %1658 = vmatprep.subr.mxu0 0.0
  %1659 = vmatpush1.msra.mxu0 0.0
  %1660 = vmatprep.subr.mxu0 0.0
  %1661 = vmatpush1.msra.mxu0 0.0
  %1662 = vmatprep.subr.mxu0 0.0
  %1663 = vmatpush1.msra.mxu0 0.0
  %1664 = vmatprep.subr.mxu0 0.0
  %1665 = vmatpush1.msra.mxu0 0.0
  %1666 = vmatprep.subr.mxu0 0.0
  %1667 = vmatpush1.msra.mxu0 0.0
  %1668 = vmatprep.subr.mxu0 0.0
  %1669 = vmatpush1.msra.mxu0 0.0
  %1670 = vmatprep.subr.mxu0 0.0
  %1671 = vmatpush1.msra.mxu0 0.0
  %1672 = vmatprep.subr.mxu0 0.0
  %1673 = vmatpush1.msra.mxu0 0.0
  %1674 = vmatprep.subr.mxu0 0.0
  %1675 = vmatpush1.msra.mxu0 0.0
  %1676 = vmatprep.subr.mxu0 0.0
  %1677 = vmatpush1.msra.mxu0 0.0
  %1678 = vmatprep.subr.mxu0 0.0
  %1679 = vmatpush1.msra.mxu0 0.0
  %1680 = vmatprep.subr.mxu0 0.0
  %1681 = vmatpush1.msra.mxu0 0.0
  %1682 = vmatprep.subr.mxu0 0.0
  %1683 = vmatpush1.msra.mxu0 0.0
  %1684 = vmatprep.subr.mxu0 0.0
  %1685 = vmatpush1.msra.mxu0 0.0
  %1686 = vmatprep.subr.mxu0 0.0
  %1687 = vmatpush1.msra.mxu0 0.0
  %1688 = vmatprep.subr.mxu0 0.0
  %1689 = vmatpush1.msra.mxu0 0.0
  %1690 = vmatprep.subr.mxu0 0.0
  %1691 = vmatpush1.msra.mxu0 0.0
  %1692 = vmatprep.subr.mxu0 0.0
  %1693 = vmatpush1.msra.mxu0 0.0
  %1694 = vmatprep.subr.mxu0 0.0
  %1695 = vmatpush1.msra.mxu0 0.0
  %1696 = vmatprep.mubr.f32.mxu0 0.0
  %1697 = vmatmul.mubr.f32.gmra.mrb[0].mxu0 %v1630
  %v1698 = vpop.f32.mrb[0].mxu0
  %v1699 = vadd.f32 %v1626, %v1698
  %v1700 = vpop.f32.mrb[0].mxu0
  %1701 = vdwg.mxu0
  %v1702 = vsub.f32 0.0, %v1699
  %v1703 = vmul.f32 %v1702, 1.442695
  %v1704 = vpow.pop %v1703
  %v1705 = vadd.f32 %v1704, 1.0
  %v1706 = vrcp.pop %v1705
  %v1708 = vlaneseq
  %v1709 = vshrl.u32 %v1708, 7
  %v1710 = vsub.s32 0, %v1709
  %v1711 = vrot.slane %v115, %v1710
  %v1712 = vlaneseq
  %v1713 = vshrl.u32 %v1712, 7
  %v1714 = vsub.s32 1, %v1713
  %v1715 = vrot.slane %v115, %v1714
  %v1719 = vsel %vm1628, %v1706, 0
  %1721 = vmatprep.subr.mxu0 %v100
  %1722 = vmatpush1.msra.mxu0 %v99
  %1723 = vmatprep.subr.mxu0 %v102
  %1724 = vmatpush1.msra.mxu0 %v101
  %1725 = vmatprep.subr.mxu0 %v104
  %1726 = vmatpush1.msra.mxu0 %v103
  %1727 = vmatprep.subr.mxu0 %v106
  %1728 = vmatpush1.msra.mxu0 %v105
  %1729 = vmatprep.subr.mxu0 %v108
  %1730 = vmatpush1.msra.mxu0 %v107
  %1731 = vmatprep.subr.mxu0 %v110
  %1732 = vmatpush1.msra.mxu0 %v109
  %1733 = vmatprep.subr.mxu0 %v112
  %1734 = vmatpush1.msra.mxu0 %v111
  %1735 = vmatprep.subr.mxu0 %v114
  %1736 = vmatpush1.msra.mxu0 %v113
  %1737 = vmatprep.subr.mxu0 0.0
  %1738 = vmatpush1.msra.mxu0 0.0
  %1739 = vmatprep.subr.mxu0 0.0
  %1740 = vmatpush1.msra.mxu0 0.0
  %1741 = vmatprep.subr.mxu0 0.0
  %1742 = vmatpush1.msra.mxu0 0.0
  %1743 = vmatprep.subr.mxu0 0.0
  %1744 = vmatpush1.msra.mxu0 0.0
  %1745 = vmatprep.subr.mxu0 0.0
  %1746 = vmatpush1.msra.mxu0 0.0
  %1747 = vmatprep.subr.mxu0 0.0
  %1748 = vmatpush1.msra.mxu0 0.0
  %1749 = vmatprep.subr.mxu0 0.0
  %1750 = vmatpush1.msra.mxu0 0.0
  %1751 = vmatprep.subr.mxu0 0.0
  %1752 = vmatpush1.msra.mxu0 0.0
  %1753 = vmatprep.subr.mxu0 0.0
  %1754 = vmatpush1.msra.mxu0 0.0
  %1755 = vmatprep.subr.mxu0 0.0
  %1756 = vmatpush1.msra.mxu0 0.0
  %1757 = vmatprep.subr.mxu0 0.0
  %1758 = vmatpush1.msra.mxu0 0.0
  %1759 = vmatprep.subr.mxu0 0.0
  %1760 = vmatpush1.msra.mxu0 0.0
  %1761 = vmatprep.subr.mxu0 0.0
  %1762 = vmatpush1.msra.mxu0 0.0
  %1763 = vmatprep.subr.mxu0 0.0
  %1764 = vmatpush1.msra.mxu0 0.0
  %1765 = vmatprep.subr.mxu0 0.0
  %1766 = vmatpush1.msra.mxu0 0.0
  %1767 = vmatprep.subr.mxu0 0.0
  %1768 = vmatpush1.msra.mxu0 0.0
  %1769 = vmatprep.subr.mxu0 0.0
  %1770 = vmatpush1.msra.mxu0 0.0
  %1771 = vmatprep.subr.mxu0 0.0
  %1772 = vmatpush1.msra.mxu0 0.0
  %1773 = vmatprep.subr.mxu0 0.0
  %1774 = vmatpush1.msra.mxu0 0.0
  %1775 = vmatprep.subr.mxu0 0.0
  %1776 = vmatpush1.msra.mxu0 0.0
  %1777 = vmatprep.subr.mxu0 0.0
  %1778 = vmatpush1.msra.mxu0 0.0
  %1779 = vmatprep.subr.mxu0 0.0
  %1780 = vmatpush1.msra.mxu0 0.0
  %1781 = vmatprep.subr.mxu0 0.0
  %1782 = vmatpush1.msra.mxu0 0.0
  %1783 = vmatprep.subr.mxu0 0.0
  %1784 = vmatpush1.msra.mxu0 0.0
  %1785 = vmatprep.mubr.f32.mxu0 0.0
  %1786 = vmatmul.mubr.f32.gmra.mrb[0].mxu0 %v1719
  %v1787 = vpop.f32.mrb[0].mxu0
  %v1788 = vadd.f32 %v1711, %v1787
  %v1789 = vpop.f32.mrb[0].mxu0
  %v1790 = vadd.f32 %v1715, %v1789
  %1791 = vdwg.mxu0
  %v1792 = vsub.f32 0.0, %v1788
  %v1793 = vmul.f32 %v1792, 1.442695
  %v1794 = vpow.pop %v1793
  %v1795 = vadd.f32 %v1794, 1.0
  %v1796 = vrcp.pop %v1795
  %v1797 = vmul.f32 %v1796, %v1790
  %v1799 = vsel %vm200, %v67, 0
  %1801 = vmatprep.subr.mxu0 0.0
  %1802 = vmatpush1.msra.mxu0 %v1797
  %1803 = vmatprep.subr.mxu0 0.0
  %1804 = vmatpush1.msra.mxu0 0.0
  %1805 = vmatprep.subr.mxu0 0.0
  %1806 = vmatpush1.msra.mxu0 0.0
  %1807 = vmatprep.subr.mxu0 0.0
  %1808 = vmatpush1.msra.mxu0 0.0
  %1809 = vmatprep.subr.mxu0 0.0
  %1810 = vmatpush1.msra.mxu0 0.0
  %1811 = vmatprep.subr.mxu0 0.0
  %1812 = vmatpush1.msra.mxu0 0.0
  %1813 = vmatprep.subr.mxu0 0.0
  %1814 = vmatpush1.msra.mxu0 0.0
  %1815 = vmatprep.subr.mxu0 0.0
  %1816 = vmatpush1.msra.mxu0 0.0
  %1817 = vmatprep.subr.mxu0 0.0
  %1818 = vmatpush1.msra.mxu0 0.0
  %1819 = vmatprep.subr.mxu0 0.0
  %1820 = vmatpush1.msra.mxu0 0.0
  %1821 = vmatprep.subr.mxu0 0.0
  %1822 = vmatpush1.msra.mxu0 0.0
  %1823 = vmatprep.subr.mxu0 0.0
  %1824 = vmatpush1.msra.mxu0 0.0
  %1825 = vmatprep.subr.mxu0 0.0
  %1826 = vmatpush1.msra.mxu0 0.0
  %1827 = vmatprep.subr.mxu0 0.0
  %1828 = vmatpush1.msra.mxu0 0.0
  %1829 = vmatprep.subr.mxu0 0.0
  %1830 = vmatpush1.msra.mxu0 0.0
  %1831 = vmatprep.subr.mxu0 0.0
  %1832 = vmatpush1.msra.mxu0 0.0
  %1833 = vmatprep.subr.mxu0 0.0
  %1834 = vmatpush1.msra.mxu0 0.0
  %1835 = vmatprep.subr.mxu0 0.0
  %1836 = vmatpush1.msra.mxu0 0.0
  %1837 = vmatprep.subr.mxu0 0.0
  %1838 = vmatpush1.msra.mxu0 0.0
  %1839 = vmatprep.subr.mxu0 0.0
  %1840 = vmatpush1.msra.mxu0 0.0
  %1841 = vmatprep.subr.mxu0 0.0
  %1842 = vmatpush1.msra.mxu0 0.0
  %1843 = vmatprep.subr.mxu0 0.0
  %1844 = vmatpush1.msra.mxu0 0.0
  %1845 = vmatprep.subr.mxu0 0.0
  %1846 = vmatpush1.msra.mxu0 0.0
  %1847 = vmatprep.subr.mxu0 0.0
  %1848 = vmatpush1.msra.mxu0 0.0
  %1849 = vmatprep.subr.mxu0 0.0
  %1850 = vmatpush1.msra.mxu0 0.0
  %1851 = vmatprep.subr.mxu0 0.0
  %1852 = vmatpush1.msra.mxu0 0.0
  %1853 = vmatprep.subr.mxu0 0.0
  %1854 = vmatpush1.msra.mxu0 0.0
  %1855 = vmatprep.subr.mxu0 0.0
  %1856 = vmatpush1.msra.mxu0 0.0
  %1857 = vmatprep.subr.mxu0 0.0
  %1858 = vmatpush1.msra.mxu0 0.0
  %1859 = vmatprep.subr.mxu0 0.0
  %1860 = vmatpush1.msra.mxu0 0.0
  %1861 = vmatprep.subr.mxu0 0.0
  %1862 = vmatpush1.msra.mxu0 0.0
  %1863 = vmatprep.subr.mxu0 0.0
  %1864 = vmatpush1.msra.mxu0 0.0
  %1865 = vmatprep.mubr.f32.mxu0 0.0
  %1866 = vmatmul.mubr.f32.gmra.mrb[0].mxu0 %v1799
  %v1867 = vpop.f32.mrb[0].mxu0
  %v1868 = vadd.f32 0.0, %v1867
  %v1869 = vpop.f32.mrb[0].mxu0
  %1870 = vdwg.mxu0
  %1871 = vst [vmem:[%s18] sm:$0xff] %v1868
  // Predicated region
  $region74: #{ggnn_forward.1} parent=0 // pred_check
    _
  $region75: #{ggnn_forward.1} parent=0 // pred_check_branch
    %1873 = sbr.rel (0) target = $region77
  $region76: #{ggnn_forward.1} parent=0 // pred_region
    _
  $region77: #{ggnn_forward.1} parent=0 // pred_fallthru
    _
  // Predicated region
  $region78: #{ggnn_forward.1} parent=0 // pred_check
    _
  $region79: #{ggnn_forward.1} parent=0 // pred_check_branch
    %1875 = sbr.rel (0) target = $region81
  $region80: #{ggnn_forward.1} parent=0 // pred_region
    _
  $region81: #{ggnn_forward.1} parent=0 // pred_fallthru
    _

</llo_original>
